<compile_context>
chip_gen: v7x
topology: tpu7x:2x2x1
jax: 0.10.0
libtpu: 0.0.40
codegen_flags: <defaults>
</compile_context>

<pallas_src>
import math
import functools

import jax
import jax.numpy as jnp
from jax import lax
from jax.experimental import pallas as pl
from jax.experimental.pallas import tpu as pltpu


# --------------------------------------------------------------------------
# helpers
# --------------------------------------------------------------------------
def _pick_tile(dim, pref):
    """Largest tile <= pref that evenly divides dim (dims here are multiples of 8)."""
    if dim <= pref:
        return dim
    for cand in (pref, 512, 256, 128, 64, 32, 16, 8):
        if cand <= pref and dim % cand == 0:
            return cand
    return dim  # TODO(synk): pad ragged dims instead of falling back to a full block


# --------------------------------------------------------------------------
# Tiled linear (y = x @ W.T, W in torch layout (out_features, in_features))
# --------------------------------------------------------------------------
def _linear_kernel(x_ref, w_ref, o_ref, acc_ref):
    @pl.when(pl.program_id(2) == 0)
    def _init():
        acc_ref[...] = jnp.zeros_like(acc_ref)

    # x: (tm, tk), w: (tn, tk)  -> contract over K (last dim of both); no explicit w.T
    acc_ref[...] += lax.dot_general(
        x_ref[...], w_ref[...],
        dimension_numbers=(((1,), (1,)), ((), ())),
        preferred_element_type=jnp.float32,
    )

    @pl.when(pl.program_id(2) == pl.num_programs(2) - 1)
    def _finalize():
        o_ref[...] = acc_ref[...].astype(o_ref.dtype)


def linear_no_bias(x2d, w, *, tm=256, tn=256, tk=512):
    """x2d: (M, K); w: (N, K) torch layout -> (M, N)."""
    M, K = x2d.shape
    N = w.shape[0]
    tm = _pick_tile(M, tm)
    tn = _pick_tile(N, tn)   # multiples of 256 preferred on v6e/v7x MXU
    tk = _pick_tile(K, tk)
    grid = (M // tm, N // tn, K // tk)
    return pl.pallas_call(
        _linear_kernel,
        out_shape=jax.ShapeDtypeStruct((M, N), x2d.dtype),
        grid=grid,
        in_specs=[
            pl.BlockSpec((tm, tk), lambda i, j, k: (i, k)),
            pl.BlockSpec((tn, tk), lambda i, j, k: (j, k)),
        ],
        out_specs=pl.BlockSpec((tm, tn), lambda i, j, k: (i, j)),
        scratch_shapes=[pltpu.VMEM((tm, tn), jnp.float32)],
        compiler_params=pltpu.CompilerParams(
            dimension_semantics=("parallel", "parallel", "arbitrary")
        ),
    )(x2d, w)


# --------------------------------------------------------------------------
# GQA causal flash attention: one (batch, kv-group) pair, KV tiled with online softmax
# --------------------------------------------------------------------------
def _gqa_flash_attn_kernel(start_ref, q_ref, k_ref, v_ref, o_ref, m_sc, l_sc, acc_sc):
    _, n_rep, T, hd = q_ref.shape
    tkv = k_ref.shape[2]
    R = n_rep * T                       # all query heads of the group, stacked on M

    kv = pl.program_id(2)
    n_kv = pl.num_programs(2)
    start_pos = start_ref[0]            # runtime scalar (SMEM) -> no recompile per step
    kv_start = kv * tkv

    @pl.when(kv == 0)
    def _init():
        m_sc[...] = jnp.full_like(m_sc, -1e30)
        l_sc[...] = jnp.zeros_like(l_sc)
        acc_sc[...] = jnp.zeros_like(acc_sc)

    # Skip KV tiles that lie entirely in the causal future of every query.
    @pl.when(kv_start <= start_pos + (T - 1))
    def _compute():
        scale = 1.0 / math.sqrt(hd)
        # native dtype into the MXU; scale folded into q (touches R*hd, not R*S elements)
        q = q_ref[...].reshape(R, hd) * scale
        k = k_ref[...].reshape(tkv, hd)
        v = v_ref[...].reshape(tkv, hd)

        # (R, tkv) scores, f32 accumulation; contract last dims (no explicit k.T)
        s = lax.dot_general(
            q, k, dimension_numbers=(((1,), (1,)), ((), ())),
            preferred_element_type=jnp.float32,
        )

        # offset-causal mask; row = head_in_group * T + query_index
        rows = lax.broadcasted_iota(jnp.int32, (R, 1), 0)
        cols = lax.broadcasted_iota(jnp.int32, (1, tkv), 1)
        q_pos = start_pos + (rows % T)               # (R, 1)
        k_pos = kv_start + cols                      # (1, tkv)
        s = jnp.where(k_pos <= q_pos, s, -1e30)      # large-negative, not finfo.min

        m_prev = m_sc[...]
        m_new = jnp.maximum(m_prev, jnp.max(s, axis=-1, keepdims=True))
        alpha = jnp.exp(m_prev - m_new)
        p = jnp.exp(s - m_new)
        l_sc[...] = alpha * l_sc[...] + jnp.sum(p, axis=-1, keepdims=True)
        acc_sc[...] = alpha * acc_sc[...] + jnp.dot(
            p.astype(v.dtype), v, preferred_element_type=jnp.float32
        )
        m_sc[...] = m_new

    @pl.when(kv == n_kv - 1)
    def _finalize():
        o = acc_sc[...] * pl.reciprocal(l_sc[...], approx=True)   # divide on the EUP
        o_ref[...] = o.reshape(1, n_rep, T, hd).astype(o_ref.dtype)


def gqa_causal_attention(q, k_cache, v_cache, start_pos):
    """q: (B, Hq, T, hd); k/v caches head-major (max_B, Hkv, S, hd) -> (B, Hq, T, hd)."""
    B, Hq, T, hd = q.shape
    Hkv, S = k_cache.shape[1], k_cache.shape[2]
    n_rep = Hq // Hkv
    R = n_rep * T
    tkv = _pick_tile(S, 512)
    start_arr = jnp.asarray(start_pos, jnp.int32).reshape((1,))

    # TODO(synk): for hd < 128 a lane-dense (heads folded into lanes) output layout and
    # an int8 (v5e/v6e) / fp8 (v7x) KV cache would further cut store/HBM cost.
    return pl.pallas_call(
        _gqa_flash_attn_kernel,
        out_shape=jax.ShapeDtypeStruct((B, Hq, T, hd), q.dtype),
        grid_spec=pltpu.PrefetchScalarGridSpec(
            num_scalar_prefetch=1,
            grid=(B, Hkv, S // tkv),
            in_specs=[
                # all n_rep query heads of kv-group g in one block (K/V DMA'd once per group)
                pl.BlockSpec((1, n_rep, T, hd), lambda b, g, kv, s: (b, g, 0, 0)),
                pl.BlockSpec((1, 1, tkv, hd), lambda b, g, kv, s: (b, g, kv, 0)),
                pl.BlockSpec((1, 1, tkv, hd), lambda b, g, kv, s: (b, g, kv, 0)),
            ],
            out_specs=pl.BlockSpec((1, n_rep, T, hd), lambda b, g, kv, s: (b, g, 0, 0)),
            scratch_shapes=[
                pltpu.VMEM((R, 1), jnp.float32),    # running max
                pltpu.VMEM((R, 1), jnp.float32),    # running denom
                pltpu.VMEM((R, hd), jnp.float32),   # running accumulator
            ],
        ),
        compiler_params=pltpu.CompilerParams(
            dimension_semantics=("parallel", "parallel", "arbitrary")
        ),
    )(start_arr, q, k_cache, v_cache)


# --------------------------------------------------------------------------
# Rotary embedding (Llama-style interleaved pairs) — plain JAX glue
# TODO(synk): rotary stays in plain JAX (tiny elementwise op); could be fused
# into the attention kernel's q/k load if it ever shows up in the profile.
# --------------------------------------------------------------------------
def precompute_rope(hd, start_pos, T, theta=10000.0):
    freqs = 1.0 / (theta ** (jnp.arange(0, hd, 2, dtype=jnp.float32) / hd))
    t = jnp.arange(T, dtype=jnp.float32) + start_pos   # works with traced start_pos
    ang = jnp.outer(t, freqs)                          # (T, hd//2)
    return jnp.cos(ang), jnp.sin(ang)


def apply_rotary(x, cos, sin):
    # x: (B, T, H, hd); cos/sin: (T, hd//2); interleaved (real, imag) pairs
    xr = x.reshape(*x.shape[:-1], -1, 2)
    x0, x1 = xr[..., 0], xr[..., 1]
    c = cos[None, :, None, :]
    s = sin[None, :, None, :]
    o0 = x0 * c - x1 * s
    o1 = x0 * s + x1 * c
    return jnp.stack([o0, o1], axis=-1).reshape(x.shape)


# --------------------------------------------------------------------------
# Module-equivalent forward (KV cache stored head-major: (max_B, n_kv_head, max_len, hd))
# Caches are donated so the per-step cache write is in place (no full-cache copy).
# --------------------------------------------------------------------------
class Config:
    n_embd = 32
    n_head = 4
    n_kv_head = 2
    max_gen_batch_size = 2
    max_model_len = 16


@functools.partial(jax.jit, static_argnums=(5, 6), donate_argnums=(3, 4))
def causal_self_attention_forward(params, x, start_pos, cache_k, cache_v,
                                  n_head, n_kv_head):
    B, T, C = x.shape
    hd = C // n_head

    # qkv projection (tiled Pallas matmul, torch-layout weight)
    qkv = linear_no_bias(x.reshape(B * T, C), params["c_attn"]).reshape(B, T, -1)
    q_dim = n_head * hd
    kv_dim = n_kv_head * hd
    q = qkv[..., :q_dim].reshape(B, T, n_head, hd)
    k = qkv[..., q_dim:q_dim + kv_dim].reshape(B, T, n_kv_head, hd)
    v = qkv[..., q_dim + kv_dim:].reshape(B, T, n_kv_head, hd)

    # rotary embedding
    cos, sin = precompute_rope(hd, start_pos, T)
    q = apply_rotary(q, cos, sin)
    k = apply_rotary(k, cos, sin)

    # KV cache update in head-major layout (only the T new tokens are transposed);
    # caches are donated -> in-place dynamic_update_slice.
    start = jnp.asarray(start_pos, jnp.int32)
    zero = jnp.int32(0)
    k_hm = jnp.transpose(k, (0, 2, 1, 3)).astype(cache_k.dtype)
    v_hm = jnp.transpose(v, (0, 2, 1, 3)).astype(cache_v.dtype)
    cache_k = lax.dynamic_update_slice(cache_k, k_hm, (zero, zero, start, zero))
    cache_v = lax.dynamic_update_slice(cache_v, v_hm, (zero, zero, start, zero))

    # attention over the full fixed-size cache, offset-causal mask inside the kernel
    q_hm = jnp.transpose(q, (0, 2, 1, 3))        # (B, Hq, T, hd)
    y = gqa_causal_attention(q_hm, cache_k, cache_v, start)

    # output projection (tiled Pallas matmul)
    y = jnp.transpose(y, (0, 2, 1, 3)).reshape(B * T, C)
    y = linear_no_bias(y, params["c_proj"]).reshape(B, T, C)
    return y, cache_k, cache_v


# --------------------------------------------------------------------------
# Pure-JAX reference (for correctness check)
# --------------------------------------------------------------------------
def reference_forward(params, x, start_pos, cache_k, cache_v, n_head, n_kv_head):
    B, T, C = x.shape
    hd = C // n_head
    n_rep = n_head // n_kv_head
    qkv = (x.reshape(B * T, C) @ params["c_attn"].T).reshape(B, T, -1)
    q_dim, kv_dim = n_head * hd, n_kv_head * hd
    q = qkv[..., :q_dim].reshape(B, T, n_head, hd)
    k = qkv[..., q_dim:q_dim + kv_dim].reshape(B, T, n_kv_head, hd)
    v = qkv[..., q_dim + kv_dim:].reshape(B, T, n_kv_head, hd)
    cos, sin = precompute_rope(hd, start_pos, T)
    q = apply_rotary(q, cos, sin)
    k = apply_rotary(k, cos, sin)
    start = jnp.asarray(start_pos, jnp.int32)
    zero = jnp.int32(0)
    cache_k = lax.dynamic_update_slice(
        cache_k, jnp.transpose(k, (0, 2, 1, 3)).astype(cache_k.dtype), (zero, zero, start, zero))
    cache_v = lax.dynamic_update_slice(
        cache_v, jnp.transpose(v, (0, 2, 1, 3)).astype(cache_v.dtype), (zero, zero, start, zero))
    qh = jnp.transpose(q, (0, 2, 1, 3))
    kh = jnp.repeat(cache_k[:B], n_rep, axis=1)
    vh = jnp.repeat(cache_v[:B], n_rep, axis=1)
    S = kh.shape[2]
    s = jnp.einsum("bhtd,bhsd->bhts", qh, kh) / math.sqrt(hd)
    q_pos = start + jnp.arange(T)[:, None]
    k_pos = jnp.arange(S)[None, :]
    s = jnp.where((k_pos <= q_pos)[None, None], s, -1e30)
    p = jax.nn.softmax(s, axis=-1)
    y = jnp.einsum("bhts,bhsd->bhtd", p, vh)
    y = jnp.transpose(y, (0, 2, 1, 3)).reshape(B * T, C) @ params["c_proj"].T
    return y.reshape(B, T, C), cache_k, cache_v


# --------------------------------------------------------------------------
if __name__ == "__main__":
    cfg = Config()
    hd = cfg.n_embd // cfg.n_head
    B, T = 2, 8

    key = jax.random.PRNGKey(0)
    k_attn, k_proj, k_x, k_xd = jax.random.split(key, 4)
    params = {
        "c_attn": 0.02 * jax.random.normal(
            k_attn, ((cfg.n_head + 2 * cfg.n_kv_head) * hd, cfg.n_embd), dtype=jnp.float32),
        "c_proj": 0.02 * jax.random.normal(
            k_proj, (cfg.n_embd, cfg.n_embd), dtype=jnp.float32),
    }
    cache_shape = (cfg.max_gen_batch_size, cfg.n_kv_head, cfg.max_model_len, hd)

    x = jax.random.normal(k_x, (B, T, cfg.n_embd), dtype=jnp.float32)
    x_dec = jax.random.normal(k_xd, (B, 1, cfg.n_embd), dtype=jnp.float32)

    # prefill (T=8, start_pos=0), then one decode step (T=1, start_pos=8).
    # Caches are donated to the jitted forward, so give the Pallas path its own buffers.
    cache_k0 = jnp.zeros(cache_shape, jnp.float32)
    cache_v0 = jnp.zeros(cache_shape, jnp.float32)
    y1, ck, cv = causal_self_attention_forward(
        params, x, jnp.int32(0), cache_k0, cache_v0, cfg.n_head, cfg.n_kv_head)
    y2, ck, cv = causal_self_attention_forward(
        params, x_dec, jnp.int32(T), ck, cv, cfg.n_head, cfg.n_kv_head)
    y1, y2 = jax.block_until_ready((y1, y2))

    # reference uses fresh (non-donated) cache buffers
    ref_ck0 = jnp.zeros(cache_shape, jnp.float32)
    ref_cv0 = jnp.zeros(cache_shape, jnp.float32)
    r1, rck, rcv = reference_forward(
        params, x, 0, ref_ck0, ref_cv0, cfg.n_head, cfg.n_kv_head)
    r2, _, _ = reference_forward(
        params, x_dec, T, rck, rcv, cfg.n_head, cfg.n_kv_head)

    assert y1.shape == (B, T, cfg.n_embd) and y2.shape == (B, 1, cfg.n_embd)
    assert bool(jnp.all(jnp.isfinite(y1))) and bool(jnp.all(jnp.isfinite(y2)))
    assert bool(jnp.allclose(y1, r1, atol=2e-3, rtol=2e-2))
    assert bool(jnp.allclose(y2, r2, atol=2e-3, rtol=2e-2))
    print("KERNEL_OK")
</pallas_src>

<mosaic_0001>
module attributes {stable_mosaic.version = 11 : i64} {
  func.func @_linear_kernel(%arg0: i32, %arg1: i32, %arg2: i32, %arg3: memref<16x32xf32, #tpu.memory_space<vmem>>, %arg4: memref<64x32xf32, #tpu.memory_space<vmem>>, %arg5: memref<16x64xf32, #tpu.memory_space<vmem>>, %arg6: memref<16x64xf32, #tpu.memory_space<vmem>>) attributes {dimension_semantics = [#tpu.dimension_semantics<parallel>, #tpu.dimension_semantics<parallel>, #tpu.dimension_semantics<arbitrary>], iteration_bounds = array<i64: 1, 1, 1>, scalar_prefetch = 0 : i64, scratch_operands = 1 : i64, tpu.core_type = #tpu.core_type<tc>, window_params = [{transform_indices = @transform_0, window_bounds = array<i64: 16, 32>}, {transform_indices = @transform_1, window_bounds = array<i64: 64, 32>}, {transform_indices = @transform_2, window_bounds = array<i64: 16, 64>}]} {
    %c0_i32 = arith.constant 0 : i32
    %0 = arith.cmpi eq, %arg2, %c0_i32 : i32
    %1 = arith.extui %0 : i1 to i32
    %c0_i32_0 = arith.constant 0 : i32
    %2 = arith.cmpi ne, %1, %c0_i32_0 : i32
    scf.if %2 {
      %cst_10 = arith.constant 0.000000e+00 : f32
      %12 = vector.broadcast %cst_10 : f32 to vector<16x64xf32>
      %c0_11 = arith.constant 0 : index
      %c0_12 = arith.constant 0 : index
      %13 = vector.load %arg6[%c0_11, %c0_12] : memref<16x64xf32, #tpu.memory_space<vmem>>, vector<16x64xf32>
      tpu.vector_store %arg6[%c0_11, %c0_12], %12 {strides = array<i32>} : memref<16x64xf32, #tpu.memory_space<vmem>>, vector<16x64xf32>,
    } else {
    }
    %c0 = arith.constant 0 : index
    %c0_1 = arith.constant 0 : index
    %3 = vector.load %arg6[%c0, %c0_1] : memref<16x64xf32, #tpu.memory_space<vmem>>, vector<16x64xf32>
    %c0_2 = arith.constant 0 : index
    %c0_3 = arith.constant 0 : index
    %4 = vector.load %arg3[%c0_2, %c0_3] : memref<16x32xf32, #tpu.memory_space<vmem>>, vector<16x32xf32>
    %c0_4 = arith.constant 0 : index
    %c0_5 = arith.constant 0 : index
    %5 = vector.load %arg4[%c0_4, %c0_5] : memref<64x32xf32, #tpu.memory_space<vmem>>, vector<64x32xf32>
    %cst = arith.constant dense<0.000000e+00> : vector<16x64xf32>
    %6 = tpu.matmul %4, %5, %cst {dimension_numbers = #tpu.dot_dimension_numbers<[1], [1], [0], [0], [0, 0, 1, 0], [], []>} : vector<16x32xf32>, vector<64x32xf32>, vector<16x64xf32> -> vector<16x64xf32>
    %7 = arith.addf %3, %6 : vector<16x64xf32>
    %c0_6 = arith.constant 0 : index
    %c0_7 = arith.constant 0 : index
    %8 = vector.load %arg6[%c0_6, %c0_7] : memref<16x64xf32, #tpu.memory_space<vmem>>, vector<16x64xf32>
    tpu.vector_store %arg6[%c0_6, %c0_7], %7 {strides = array<i32>} : memref<16x64xf32, #tpu.memory_space<vmem>>, vector<16x64xf32>,
    %c0_i32_8 = arith.constant 0 : i32
    %9 = arith.cmpi eq, %arg2, %c0_i32_8 : i32
    %10 = arith.extui %9 : i1 to i32
    %c0_i32_9 = arith.constant 0 : i32
    %11 = arith.cmpi ne, %10, %c0_i32_9 : i32
    scf.if %11 {
      %c0_10 = arith.constant 0 : index
      %c0_11 = arith.constant 0 : index
      %12 = vector.load %arg6[%c0_10, %c0_11] : memref<16x64xf32, #tpu.memory_space<vmem>>, vector<16x64xf32>
      %c0_12 = arith.constant 0 : index
      %c0_13 = arith.constant 0 : index
      %13 = vector.load %arg5[%c0_12, %c0_13] : memref<16x64xf32, #tpu.memory_space<vmem>>, vector<16x64xf32>
      tpu.vector_store %arg5[%c0_12, %c0_13], %12 {strides = array<i32>} : memref<16x64xf32, #tpu.memory_space<vmem>>, vector<16x64xf32>,
    } else {
    }
    return
  }
  func.func @transform_0(%arg0: i32, %arg1: i32, %arg2: i32) -> (i32, i32) {
    %c0_i32 = arith.constant 0 : i32
    return %arg0, %arg2 : i32, i32
  }
  func.func @transform_1(%arg0: i32, %arg1: i32, %arg2: i32) -> (i32, i32) {
    %c0_i32 = arith.constant 0 : i32
    return %arg1, %arg2 : i32, i32
  }
  func.func @transform_2(%arg0: i32, %arg1: i32, %arg2: i32) -> (i32, i32) {
    %c0_i32 = arith.constant 0 : i32
    return %arg0, %arg1 : i32, i32
  }
}

module attributes {stable_mosaic.version = 11 : i64} {
  func.func @_gqa_flash_attn_kernel(%arg0: i32, %arg1: i32, %arg2: i32, %arg3: memref<1xi32, #tpu.memory_space<smem>>, %arg4: memref<1x2x8x8xf32, #tpu.memory_space<vmem>>, %arg5: memref<1x1x16x8xf32, #tpu.memory_space<vmem>>, %arg6: memref<1x1x16x8xf32, #tpu.memory_space<vmem>>, %arg7: memref<1x2x8x8xf32, #tpu.memory_space<vmem>>, %arg8: memref<16x1xf32, #tpu.memory_space<vmem>>, %arg9: memref<16x1xf32, #tpu.memory_space<vmem>>, %arg10: memref<16x8xf32, #tpu.memory_space<vmem>>) attributes {dimension_semantics = [#tpu.dimension_semantics<parallel>, #tpu.dimension_semantics<parallel>, #tpu.dimension_semantics<arbitrary>], iteration_bounds = array<i64: 2, 2, 1>, scalar_prefetch = 1 : i64, scratch_operands = 3 : i64, tpu.core_type = #tpu.core_type<tc>, window_params = [{transform_indices = @transform_0, window_bounds = array<i64: 1, 2, 8, 8>}, {transform_indices = @transform_1, window_bounds = array<i64: 1, 1, 16, 8>}, {transform_indices = @transform_2, window_bounds = array<i64: 1, 1, 16, 8>}, {transform_indices = @transform_3, window_bounds = array<i64: 1, 2, 8, 8>}]} {
    %c0 = arith.constant 0 : index
    %0 = memref.load %arg3[%c0] : memref<1xi32, #tpu.memory_space<smem>>
    %c16_i32 = arith.constant 16 : i32
    %1 = arith.muli %arg2, %c16_i32 : i32
    %c0_i32 = arith.constant 0 : i32
    %2 = arith.cmpi eq, %arg2, %c0_i32 : i32
    %3 = arith.extui %2 : i1 to i32
    %c0_i32_0 = arith.constant 0 : i32
    %4 = arith.cmpi ne, %3, %c0_i32_0 : i32
    scf.if %4 {
      %cst = arith.constant -1.000000e+30 : f32
      %12 = vector.broadcast %cst : f32 to vector<16x1xf32>
      %c0_4 = arith.constant 0 : index
      %c0_5 = arith.constant 0 : index
      %13 = vector.load %arg8[%c0_4, %c0_5] : memref<16x1xf32, #tpu.memory_space<vmem>>, vector<16x1xf32>
      tpu.vector_store %arg8[%c0_4, %c0_5], %12 {strides = array<i32>} : memref<16x1xf32, #tpu.memory_space<vmem>>, vector<16x1xf32>,
      %cst_6 = arith.constant 0.000000e+00 : f32
      %14 = vector.broadcast %cst_6 : f32 to vector<16x1xf32>
      %c0_7 = arith.constant 0 : index
      %c0_8 = arith.constant 0 : index
      %15 = vector.load %arg9[%c0_7, %c0_8] : memref<16x1xf32, #tpu.memory_space<vmem>>, vector<16x1xf32>
      tpu.vector_store %arg9[%c0_7, %c0_8], %14 {strides = array<i32>} : memref<16x1xf32, #tpu.memory_space<vmem>>, vector<16x1xf32>,
      %cst_9 = arith.constant 0.000000e+00 : f32
      %16 = vector.broadcast %cst_9 : f32 to vector<16x8xf32>
      %c0_10 = arith.constant 0 : index
      %c0_11 = arith.constant 0 : index
      %17 = vector.load %arg10[%c0_10, %c0_11] : memref<16x8xf32, #tpu.memory_space<vmem>>, vector<16x8xf32>
      tpu.vector_store %arg10[%c0_10, %c0_11], %16 {strides = array<i32>} : memref<16x8xf32, #tpu.memory_space<vmem>>, vector<16x8xf32>,
    } else {
    }
    %c7_i32 = arith.constant 7 : i32
    %5 = arith.addi %0, %c7_i32 : i32
    %6 = arith.cmpi sle, %1, %5 : i32
    %7 = arith.extui %6 : i1 to i32
    %c0_i32_1 = arith.constant 0 : i32
    %8 = arith.cmpi ne, %7, %c0_i32_1 : i32
    scf.if %8 {
      %c0_4 = arith.constant 0 : index
      %c0_5 = arith.constant 0 : index
      %c0_6 = arith.constant 0 : index
      %c0_7 = arith.constant 0 : index
      %12 = vector.load %arg4[%c0_4, %c0_5, %c0_6, %c0_7] : memref<1x2x8x8xf32, #tpu.memory_space<vmem>>, vector<1x2x8x8xf32>
      %13 = vector.shape_cast %12 : vector<1x2x8x8xf32> to vector<16x8xf32>
      %cst = arith.constant 0.353553385 : f32
      %14 = vector.broadcast %cst : f32 to vector<16x8xf32>
      %15 = arith.mulf %13, %14 : vector<16x8xf32>
      %c0_8 = arith.constant 0 : index
      %c0_9 = arith.constant 0 : index
      %c0_10 = arith.constant 0 : index
      %c0_11 = arith.constant 0 : index
      %16 = vector.load %arg5[%c0_8, %c0_9, %c0_10, %c0_11] : memref<1x1x16x8xf32, #tpu.memory_space<vmem>>, vector<1x1x16x8xf32>
      %17 = vector.shape_cast %16 : vector<1x1x16x8xf32> to vector<16x8xf32>
      %c0_12 = arith.constant 0 : index
      %c0_13 = arith.constant 0 : index
      %c0_14 = arith.constant 0 : index
      %c0_15 = arith.constant 0 : index
      %18 = vector.load %arg6[%c0_12, %c0_13, %c0_14, %c0_15] : memref<1x1x16x8xf32, #tpu.memory_space<vmem>>, vector<1x1x16x8xf32>
      %19 = vector.shape_cast %18 : vector<1x1x16x8xf32> to vector<16x8xf32>
      %cst_16 = arith.constant dense<0.000000e+00> : vector<16x16xf32>
      %20 = tpu.matmul %15, %17, %cst_16 {dimension_numbers = #tpu.dot_dimension_numbers<[1], [1], [0], [0], [0, 0, 1, 0], [], []>} : vector<16x8xf32>, vector<16x8xf32>, vector<16x16xf32> -> vector<16x16xf32>
      %21 = tpu.iota {dimensions = array<i32: 0>} : vector<16x1xi32>
      %22 = tpu.iota {dimensions = array<i32: 1>} : vector<1x16xi32>
      %c8_i32 = arith.constant 8 : i32
      %c0_i32_17 = arith.constant 0 : i32
      %23 = arith.cmpi eq, %c8_i32, %c0_i32_17 : i32
      %c1_i32 = arith.constant 1 : i32
      %24 = arith.select %23, %c1_i32, %c8_i32 : i32
      %25 = vector.broadcast %24 : i32 to vector<16x1xi32>
      %26 = arith.remsi %21, %25 : vector<16x1xi32>
      %c0_i32_18 = arith.constant 0 : i32
      %27 = vector.broadcast %c0_i32_18 : i32 to vector<16x1xi32>
      %28 = arith.cmpi ne, %26, %27 : vector<16x1xi32>
      %c0_i32_19 = arith.constant 0 : i32
      %29 = vector.broadcast %c0_i32_19 : i32 to vector<16x1xi32>
      %30 = arith.cmpi slt, %26, %29 : vector<16x1xi32>
      %c0_i32_20 = arith.constant 0 : i32
      %31 = arith.cmpi slt, %24, %c0_i32_20 : i32
      %32 = vector.broadcast %31 : i1 to vector<16x1xi1>
      %33 = vector.broadcast %32 : vector<16x1xi1> to vector<16x1xi1>
      %34 = arith.xori %30, %33 : vector<16x1xi1>
      %35 = arith.andi %34, %28 : vector<16x1xi1>
      %36 = vector.broadcast %24 : i32 to vector<16x1xi32>
      %37 = arith.addi %26, %36 : vector<16x1xi32>
      %38 = arith.select %35, %37, %26 : vector<16x1xi1>, vector<16x1xi32>
      %39 = vector.broadcast %0 : i32 to vector<16x1xi32>
      %40 = arith.addi %39, %38 : vector<16x1xi32>
      %41 = vector.broadcast %1 : i32 to vector<1x16xi32>
      %42 = arith.addi %41, %22 : vector<1x16xi32>
      %43 = vector.broadcast %42 : vector<1x16xi32> to vector<16x16xi32>
      %44 = vector.broadcast %40 : vector<16x1xi32> to vector<16x16xi32>
      %45 = arith.cmpi sle, %43, %44 : vector<16x16xi32>
      %cst_21 = arith.constant -1.000000e+30 : f32
      %46 = vector.broadcast %cst_21 : f32 to vector<16x16xf32>
      %47 = arith.select %45, %20, %46 : vector<16x16xi1>, vector<16x16xf32>
      %c0_22 = arith.constant 0 : index
      %c0_23 = arith.constant 0 : index
      %48 = vector.load %arg8[%c0_22, %c0_23] : memref<16x1xf32, #tpu.memory_space<vmem>>, vector<16x1xf32>
      %cst_24 = arith.constant dense<0xFF800000> : vector<16xf32>
      %49 = vector.multi_reduction <maximumf>, %47, %cst_24 [1] : vector<16x16xf32> to vector<16xf32>
      %50 = vector.shape_cast %49 : vector<16xf32> to vector<16x1xf32>
      %51 = arith.maximumf %48, %50 : vector<16x1xf32>
      %52 = arith.subf %48, %51 : vector<16x1xf32>
      %53 = math.exp %52 : vector<16x1xf32>
      %54 = vector.broadcast %51 : vector<16x1xf32> to vector<16x16xf32>
      %55 = arith.subf %47, %54 : vector<16x16xf32>
      %56 = math.exp %55 : vector<16x16xf32>
      %c0_25 = arith.constant 0 : index
      %c0_26 = arith.constant 0 : index
      %57 = vector.load %arg9[%c0_25, %c0_26] : memref<16x1xf32, #tpu.memory_space<vmem>>, vector<16x1xf32>
      %58 = arith.mulf %53, %57 : vector<16x1xf32>
      %cst_27 = arith.constant dense<0.000000e+00> : vector<16xf32>
      %59 = vector.multi_reduction <add>, %56, %cst_27 [1] : vector<16x16xf32> to vector<16xf32>
      %60 = vector.shape_cast %59 : vector<16xf32> to vector<16x1xf32>
      %61 = arith.addf %58, %60 : vector<16x1xf32>
      %c0_28 = arith.constant 0 : index
      %c0_29 = arith.constant 0 : index
      %62 = vector.load %arg9[%c0_28, %c0_29] : memref<16x1xf32, #tpu.memory_space<vmem>>, vector<16x1xf32>
      tpu.vector_store %arg9[%c0_28, %c0_29], %61 {strides = array<i32>} : memref<16x1xf32, #tpu.memory_space<vmem>>, vector<16x1xf32>,
      %c0_30 = arith.constant 0 : index
      %c0_31 = arith.constant 0 : index
      %63 = vector.load %arg10[%c0_30, %c0_31] : memref<16x8xf32, #tpu.memory_space<vmem>>, vector<16x8xf32>
      %64 = vector.broadcast %53 : vector<16x1xf32> to vector<16x8xf32>
      %65 = arith.mulf %64, %63 : vector<16x8xf32>
      %cst_32 = arith.constant dense<0.000000e+00> : vector<16x8xf32>
      %66 = tpu.matmul %56, %19, %cst_32 {dimension_numbers = #tpu.dot_dimension_numbers<[1], [0], [0], [1], [0, 0, 1, 1], [], []>} : vector<16x16xf32>, vector<16x8xf32>, vector<16x8xf32> -> vector<16x8xf32>
      %67 = arith.addf %65, %66 : vector<16x8xf32>
      %c0_33 = arith.constant 0 : index
      %c0_34 = arith.constant 0 : index
      %68 = vector.load %arg10[%c0_33, %c0_34] : memref<16x8xf32, #tpu.memory_space<vmem>>, vector<16x8xf32>
      tpu.vector_store %arg10[%c0_33, %c0_34], %67 {strides = array<i32>} : memref<16x8xf32, #tpu.memory_space<vmem>>, vector<16x8xf32>,
      %c0_35 = arith.constant 0 : index
      %c0_36 = arith.constant 0 : index
      %69 = vector.load %arg8[%c0_35, %c0_36] : memref<16x1xf32, #tpu.memory_space<vmem>>, vector<16x1xf32>
      tpu.vector_store %arg8[%c0_35, %c0_36], %51 {strides = array<i32>} : memref<16x1xf32, #tpu.memory_space<vmem>>, vector<16x1xf32>,
    } else {
    }
    %c0_i32_2 = arith.constant 0 : i32
    %9 = arith.cmpi eq, %arg2, %c0_i32_2 : i32
    %10 = arith.extui %9 : i1 to i32
    %c0_i32_3 = arith.constant 0 : i32
    %11 = arith.cmpi ne, %10, %c0_i32_3 : i32
    scf.if %11 {
      %c0_4 = arith.constant 0 : index
      %c0_5 = arith.constant 0 : index
      %12 = vector.load %arg10[%c0_4, %c0_5] : memref<16x8xf32, #tpu.memory_space<vmem>>, vector<16x8xf32>
      %c0_6 = arith.constant 0 : index
      %c0_7 = arith.constant 0 : index
      %13 = vector.load %arg9[%c0_6, %c0_7] : memref<16x1xf32, #tpu.memory_space<vmem>>, vector<16x1xf32>
      %14 = tpu.reciprocal %13 {approx = true} : vector<16x1xf32> -> vector<16x1xf32>
      %15 = vector.broadcast %14 : vector<16x1xf32> to vector<16x8xf32>
      %16 = arith.mulf %12, %15 : vector<16x8xf32>
      %17 = vector.shape_cast %16 : vector<16x8xf32> to vector<1x2x8x8xf32>
      %c0_8 = arith.constant 0 : index
      %c0_9 = arith.constant 0 : index
      %c0_10 = arith.constant 0 : index
      %c0_11 = arith.constant 0 : index
      %18 = vector.load %arg7[%c0_8, %c0_9, %c0_10, %c0_11] : memref<1x2x8x8xf32, #tpu.memory_space<vmem>>, vector<1x2x8x8xf32>
      tpu.vector_store %arg7[%c0_8, %c0_9, %c0_10, %c0_11], %17 {strides = array<i32>} : memref<1x2x8x8xf32, #tpu.memory_space<vmem>>, vector<1x2x8x8xf32>,
    } else {
    }
    return
  }
  func.func @transform_0(%arg0: i32, %arg1: i32, %arg2: i32, %arg3: memref<1xi32, #tpu.memory_space<smem>>) -> (i32, i32, i32, i32) {
    %c0_i32 = arith.constant 0 : i32
    %c0_i32_0 = arith.constant 0 : i32
    %c0_i32_1 = arith.constant 0 : i32
    return %arg0, %arg1, %c0_i32, %c0_i32_0 : i32, i32, i32, i32
  }
  func.func @transform_1(%arg0: i32, %arg1: i32, %arg2: i32, %arg3: memref<1xi32, #tpu.memory_space<smem>>) -> (i32, i32, i32, i32) {
    %c0_i32 = arith.constant 0 : i32
    %c0_i32_0 = arith.constant 0 : i32
    return %arg0, %arg1, %arg2, %c0_i32 : i32, i32, i32, i32
  }
  func.func @transform_2(%arg0: i32, %arg1: i32, %arg2: i32, %arg3: memref<1xi32, #tpu.memory_space<smem>>) -> (i32, i32, i32, i32) {
    %c0_i32 = arith.constant 0 : i32
    %c0_i32_0 = arith.constant 0 : i32
    return %arg0, %arg1, %arg2, %c0_i32 : i32, i32, i32, i32
  }
  func.func @transform_3(%arg0: i32, %arg1: i32, %arg2: i32, %arg3: memref<1xi32, #tpu.memory_space<smem>>) -> (i32, i32, i32, i32) {
    %c0_i32 = arith.constant 0 : i32
    %c0_i32_0 = arith.constant 0 : i32
    %c0_i32_1 = arith.constant 0 : i32
    return %arg0, %arg1, %c0_i32, %c0_i32_0 : i32, i32, i32, i32
  }
}

module attributes {stable_mosaic.version = 11 : i64} {
  func.func @_linear_kernel(%arg0: i32, %arg1: i32, %arg2: i32, %arg3: memref<16x32xf32, #tpu.memory_space<vmem>>, %arg4: memref<32x32xf32, #tpu.memory_space<vmem>>, %arg5: memref<16x32xf32, #tpu.memory_space<vmem>>, %arg6: memref<16x32xf32, #tpu.memory_space<vmem>>) attributes {dimension_semantics = [#tpu.dimension_semantics<parallel>, #tpu.dimension_semantics<parallel>, #tpu.dimension_semantics<arbitrary>], iteration_bounds = array<i64: 1, 1, 1>, scalar_prefetch = 0 : i64, scratch_operands = 1 : i64, tpu.core_type = #tpu.core_type<tc>, window_params = [{transform_indices = @transform_0, window_bounds = array<i64: 16, 32>}, {transform_indices = @transform_1, window_bounds = array<i64: 32, 32>}, {transform_indices = @transform_2, window_bounds = array<i64: 16, 32>}]} {
    %c0_i32 = arith.constant 0 : i32
    %0 = arith.cmpi eq, %arg2, %c0_i32 : i32
    %1 = arith.extui %0 : i1 to i32
    %c0_i32_0 = arith.constant 0 : i32
    %2 = arith.cmpi ne, %1, %c0_i32_0 : i32
    scf.if %2 {
      %cst_10 = arith.constant 0.000000e+00 : f32
      %12 = vector.broadcast %cst_10 : f32 to vector<16x32xf32>
      %c0_11 = arith.constant 0 : index
      %c0_12 = arith.constant 0 : index
      %13 = vector.load %arg6[%c0_11, %c0_12] : memref<16x32xf32, #tpu.memory_space<vmem>>, vector<16x32xf32>
      tpu.vector_store %arg6[%c0_11, %c0_12], %12 {strides = array<i32>} : memref<16x32xf32, #tpu.memory_space<vmem>>, vector<16x32xf32>,
    } else {
    }
    %c0 = arith.constant 0 : index
    %c0_1 = arith.constant 0 : index
    %3 = vector.load %arg6[%c0, %c0_1] : memref<16x32xf32, #tpu.memory_space<vmem>>, vector<16x32xf32>
    %c0_2 = arith.constant 0 : index
    %c0_3 = arith.constant 0 : index
    %4 = vector.load %arg3[%c0_2, %c0_3] : memref<16x32xf32, #tpu.memory_space<vmem>>, vector<16x32xf32>
    %c0_4 = arith.constant 0 : index
    %c0_5 = arith.constant 0 : index
    %5 = vector.load %arg4[%c0_4, %c0_5] : memref<32x32xf32, #tpu.memory_space<vmem>>, vector<32x32xf32>
    %cst = arith.constant dense<0.000000e+00> : vector<16x32xf32>
    %6 = tpu.matmul %4, %5, %cst {dimension_numbers = #tpu.dot_dimension_numbers<[1], [1], [0], [0], [0, 0, 1, 0], [], []>} : vector<16x32xf32>, vector<32x32xf32>, vector<16x32xf32> -> vector<16x32xf32>
    %7 = arith.addf %3, %6 : vector<16x32xf32>
    %c0_6 = arith.constant 0 : index
    %c0_7 = arith.constant 0 : index
    %8 = vector.load %arg6[%c0_6, %c0_7] : memref<16x32xf32, #tpu.memory_space<vmem>>, vector<16x32xf32>
    tpu.vector_store %arg6[%c0_6, %c0_7], %7 {strides = array<i32>} : memref<16x32xf32, #tpu.memory_space<vmem>>, vector<16x32xf32>,
    %c0_i32_8 = arith.constant 0 : i32
    %9 = arith.cmpi eq, %arg2, %c0_i32_8 : i32
    %10 = arith.extui %9 : i1 to i32
    %c0_i32_9 = arith.constant 0 : i32
    %11 = arith.cmpi ne, %10, %c0_i32_9 : i32
    scf.if %11 {
      %c0_10 = arith.constant 0 : index
      %c0_11 = arith.constant 0 : index
      %12 = vector.load %arg6[%c0_10, %c0_11] : memref<16x32xf32, #tpu.memory_space<vmem>>, vector<16x32xf32>
      %c0_12 = arith.constant 0 : index
      %c0_13 = arith.constant 0 : index
      %13 = vector.load %arg5[%c0_12, %c0_13] : memref<16x32xf32, #tpu.memory_space<vmem>>, vector<16x32xf32>
      tpu.vector_store %arg5[%c0_12, %c0_13], %12 {strides = array<i32>} : memref<16x32xf32, #tpu.memory_space<vmem>>, vector<16x32xf32>,
    } else {
    }
    return
  }
  func.func @transform_0(%arg0: i32, %arg1: i32, %arg2: i32) -> (i32, i32) {
    %c0_i32 = arith.constant 0 : i32
    return %arg0, %arg2 : i32, i32
  }
  func.func @transform_1(%arg0: i32, %arg1: i32, %arg2: i32) -> (i32, i32) {
    %c0_i32 = arith.constant 0 : i32
    return %arg1, %arg2 : i32, i32
  }
  func.func @transform_2(%arg0: i32, %arg1: i32, %arg2: i32) -> (i32, i32) {
    %c0_i32 = arith.constant 0 : i32
    return %arg0, %arg1 : i32, i32
  }
}

</mosaic_0001>

<llo_original>
// kernel: causal_self_attention_forward.3
$region0: #{causal_self_attention_forward.3}
  #allocation0 [shape = 'u32[]', space=smem, size = 0x4, offset = 0x4, fixed_abs, tag = 'smem constant byte address 0x4 - core index']
  #allocation1 [shape = 'u32[144,128]{1,0:T(1,128)}', space=vmem, size = 0x12000, scoped, tag = 'internal scratch']
  #allocation2 [shape = 'f32[16,64]{1,0:T(8,128)}', space=vmem, size = 0x2000, scoped, tag = 'scratch operand']
  %s0 = inlined_call_operand.vmem [shape: f32[16,32], index: 0, kind: input, shape index: {}]
  %s1 = inlined_call_operand.vmem [shape: f32[64,32], index: 1, kind: input, shape index: {}]
  %s2 = inlined_call_operand.vmem [shape: f32[16,64], index: 2, kind: output, shape index: {}]
  %s3 = sld [smem:[#allocation0]]
  $region26: #{causal_self_attention_forward.3} parent=0
    _
  %s5 = ssub.s32 1, %s3
  %s6 = scalar_select 0, %s5, %s3
  // Predicated region
  $region2: #{causal_self_attention_forward.3} parent=0 // pred_check
    _
  $region3: #{causal_self_attention_forward.3} parent=0 // pred_check_branch
    %8 = sbr.rel (0) target = $region5
  $region4: #{causal_self_attention_forward.3} parent=0 // pred_region
    _
  $region5: #{causal_self_attention_forward.3} parent=0 // pred_fallthru
    _
  // Predicated region
  $region6: #{causal_self_attention_forward.3} parent=0 // pred_check
    _
  $region7: #{causal_self_attention_forward.3} parent=0 // pred_check_branch
    %10 = sbr.rel (0) target = $region9
  $region8: #{causal_self_attention_forward.3} parent=0 // pred_region
    _
  $region9: #{causal_self_attention_forward.3} parent=0 // pred_fallthru
    _
  %p11 = scmp.eq.s32.totalorder 0, 0
  // Predicated region
  $region10: #{causal_self_attention_forward.3} parent=0 // pred_check
    %p12 = pneg %p11
  $region11: #{causal_self_attention_forward.3} parent=0 // pred_check_branch
    %14 = sbr.rel (%p12) target = $region13
  $region12: #{causal_self_attention_forward.3} parent=0 // pred_region
    %vm15 = vcmask 523264
    %16 = vst.msk [vmem:[#allocation2] sm:$0xff] %vm15, 0.0
    %17 = vst.msk [vmem:[#allocation2 + $0x8] sm:$0xff] %vm15, 0.0
  $region13: #{causal_self_attention_forward.3} parent=0 // pred_fallthru
    _
  %v18 = vld [vmem:[#allocation2] sm:$0xff]
  %v19 = vld [vmem:[#allocation2 + $0x8] sm:$0xff]
  %v20 = vld [vmem:[%s0] sm:$0xff]
  %v21 = vld [vmem:[%s0 + $0x8] sm:$0xff]
  %v22 = vld [vmem:[%s1] sm:$0xff]
  %v23 = vld [vmem:[%s1 + $0x8] sm:$0xff]
  %v24 = vld [vmem:[%s1 + $0x10] sm:$0xff]
  %v25 = vld [vmem:[%s1 + $0x18] sm:$0xff]
  %v26 = vld [vmem:[%s1 + $0x20] sm:$0xff]
  %v27 = vld [vmem:[%s1 + $0x28] sm:$0xff]
  %v28 = vld [vmem:[%s1 + $0x30] sm:$0xff]
  %v29 = vld [vmem:[%s1 + $0x38] sm:$0xff]
  %vm30 = vcmask 261120
  %v32 = vsel %vm30, %v20, 0
  %v35 = vsel %vm30, %v21, 0
  %v38 = vsel %vm30, %v22, 0
  %v41 = vsel %vm30, %v23, 0
  %v44 = vsel %vm30, %v24, 0
  %v47 = vsel %vm30, %v25, 0
  %v50 = vsel %vm30, %v26, 0
  %v53 = vsel %vm30, %v27, 0
  %v56 = vsel %vm30, %v28, 0
  %v59 = vsel %vm30, %v29, 0
  %61 = vmatprep.subr.mxu0 0.0
  %62 = vmatpush1.xpose.msra.mxu0 %v38
  %63 = vmatprep.subr.mxu0 0.0
  %64 = vmatpush1.xpose.msra.mxu0 %v41
  %65 = vmatprep.subr.mxu0 0.0
  %66 = vmatpush1.xpose.msra.mxu0 %v44
  %67 = vmatprep.subr.mxu0 0.0
  %68 = vmatpush1.xpose.msra.mxu0 %v47
  %69 = vmatprep.subr.mxu0 0.0
  %70 = vmatpush1.xpose.msra.mxu0 %v50
  %71 = vmatprep.subr.mxu0 0.0
  %72 = vmatpush1.xpose.msra.mxu0 %v53
  %73 = vmatprep.subr.mxu0 0.0
  %74 = vmatpush1.xpose.msra.mxu0 %v56
  %75 = vmatprep.subr.mxu0 0.0
  %76 = vmatpush1.xpose.msra.mxu0 %v59
  %77 = vmatprep.subr.mxu0 0.0
  %78 = vmatpush1.xpose.msra.mxu0 0.0
  %79 = vmatprep.subr.mxu0 0.0
  %80 = vmatpush1.xpose.msra.mxu0 0.0
  %81 = vmatprep.subr.mxu0 0.0
  %82 = vmatpush1.xpose.msra.mxu0 0.0
  %83 = vmatprep.subr.mxu0 0.0
  %84 = vmatpush1.xpose.msra.mxu0 0.0
  %85 = vmatprep.subr.mxu0 0.0
  %86 = vmatpush1.xpose.msra.mxu0 0.0
  %87 = vmatprep.subr.mxu0 0.0
  %88 = vmatpush1.xpose.msra.mxu0 0.0
  %89 = vmatprep.subr.mxu0 0.0
  %90 = vmatpush1.xpose.msra.mxu0 0.0
  %91 = vmatprep.subr.mxu0 0.0
  %92 = vmatpush1.xpose.msra.mxu0 0.0
  %93 = vmatprep.subr.mxu0 0.0
  %94 = vmatpush1.xpose.msra.mxu0 0.0
  %95 = vmatprep.subr.mxu0 0.0
  %96 = vmatpush1.xpose.msra.mxu0 0.0
  %97 = vmatprep.subr.mxu0 0.0
  %98 = vmatpush1.xpose.msra.mxu0 0.0
  %99 = vmatprep.subr.mxu0 0.0
  %100 = vmatpush1.xpose.msra.mxu0 0.0
  %101 = vmatprep.subr.mxu0 0.0
  %102 = vmatpush1.xpose.msra.mxu0 0.0
  %103 = vmatprep.subr.mxu0 0.0
  %104 = vmatpush1.xpose.msra.mxu0 0.0
  %105 = vmatprep.subr.mxu0 0.0
  %106 = vmatpush1.xpose.msra.mxu0 0.0
  %107 = vmatprep.subr.mxu0 0.0
  %108 = vmatpush1.xpose.msra.mxu0 0.0
  %109 = vmatprep.subr.mxu0 0.0
  %110 = vmatpush1.xpose.msra.mxu0 0.0
  %111 = vmatprep.subr.mxu0 0.0
  %112 = vmatpush1.xpose.msra.mxu0 0.0
  %113 = vmatprep.subr.mxu0 0.0
  %114 = vmatpush1.xpose.msra.mxu0 0.0
  %115 = vmatprep.subr.mxu0 0.0
  %116 = vmatpush1.xpose.msra.mxu0 0.0
  %117 = vmatprep.subr.mxu0 0.0
  %118 = vmatpush1.xpose.msra.mxu0 0.0
  %119 = vmatprep.subr.mxu0 0.0
  %120 = vmatpush1.xpose.msra.mxu0 0.0
  %121 = vmatprep.subr.mxu0 0.0
  %122 = vmatpush1.xpose.msra.mxu0 0.0
  %123 = vmatprep.subr.mxu0 0.0
  %124 = vmatpush1.xpose.msra.mxu0 0.0
  %125 = vmatprep.mubr.f32.mxu0 0.0
  %126 = vmatmul.mubr.f32.gmra.mrb[0].mxu0 %v32
  %v127 = vpop.f32.mrb[0].mxu0
  %v128 = vadd.f32 0.0, %v127
  %v129 = vpop.f32.mrb[0].mxu0
  %130 = vmatprep.mubr.f32.mxu0 0.0
  %131 = vmatmul.mubr.f32.gmra.mrb[0].mxu0 %v35
  %v132 = vpop.f32.mrb[0].mxu0
  %v133 = vadd.f32 0.0, %v132
  %v134 = vpop.f32.mrb[0].mxu0
  %135 = vdwg.mxu0
  %v136 = vadd.f32 %v18, %v128
  %v137 = vadd.f32 %v19, %v133
  %vm138 = vcmask 523264
  %139 = vst.msk [vmem:[#allocation2] sm:$0xff] %vm138, %v136
  %140 = vst.msk [vmem:[#allocation2 + $0x8] sm:$0xff] %vm138, %v137
  // Predicated region
  $region14: #{causal_self_attention_forward.3} parent=0 // pred_check
    %p141 = pneg %p11
  $region15: #{causal_self_attention_forward.3} parent=0 // pred_check_branch
    %143 = sbr.rel (%p141) target = $region17
  $region16: #{causal_self_attention_forward.3} parent=0 // pred_region
    %v144 = vld [vmem:[#allocation2] sm:$0xff]
    %v145 = vld [vmem:[#allocation2 + $0x8] sm:$0xff]
    %146 = vst.msk [vmem:[%s2] sm:$0xff] %vm138, %v144
    %147 = vst.msk [vmem:[%s2 + $0x8] sm:$0xff] %vm138, %v145
  $region17: #{causal_self_attention_forward.3} parent=0 // pred_fallthru
    _
  // Predicated region
  $region18: #{causal_self_attention_forward.3} parent=0 // pred_check
    _
  $region19: #{causal_self_attention_forward.3} parent=0 // pred_check_branch
    %149 = sbr.rel (0) target = $region21
  $region20: #{causal_self_attention_forward.3} parent=0 // pred_region
    _
  $region21: #{causal_self_attention_forward.3} parent=0 // pred_fallthru
    _
  // Predicated region
  $region22: #{causal_self_attention_forward.3} parent=0 // pred_check
    _
  $region23: #{causal_self_attention_forward.3} parent=0 // pred_check_branch
    %151 = sbr.rel (0) target = $region25
  $region24: #{causal_self_attention_forward.3} parent=0 // pred_region
    _
  $region25: #{causal_self_attention_forward.3} parent=0 // pred_fallthru
    _

// kernel: causal_self_attention_forward.4
$region0: #{causal_self_attention_forward.4}
  #allocation0 [shape = 'u32[]', space=smem, size = 0x4, offset = 0x4, fixed_abs, tag = 'smem constant byte address 0x4 - core index']
  #allocation1 [shape = 'u32[144,128]{1,0:T(1,128)}', space=vmem, size = 0x12000, scoped, tag = 'internal scratch']
  #allocation2 [shape = 'f32[16,1]{1,0:T(8,128)}', space=vmem, size = 0x2000, scoped, tag = 'scratch operand']
  #allocation3 [shape = 'f32[16,1]{1,0:T(8,128)}', space=vmem, size = 0x2000, scoped, tag = 'scratch operand']
  #allocation4 [shape = 'f32[16,8]{1,0:T(8,128)}', space=vmem, size = 0x2000, scoped, tag = 'scratch operand']
  #allocation5 [shape = 's32[1]{0}', space=sflag, size = 0x4, scoped, tag = 'scoped memory for causal_self_attention_forward.4']
  #allocation6 [shape = 's32[1]{0:T(128)S(6)}', space=smem, size = 0x200, scoped, tag = 'prefetched SMEM operand 0']
  %s0 = inlined_call_operand.<no memory space> [shape: s32[1], index: 0, kind: input, shape index: {}]
  %s1 = inlined_call_operand.vmem [shape: f32[2,4,8,8], index: 1, kind: input, shape index: {}]
  %s2 = inlined_call_operand.vmem [shape: f32[2,2,16,8], index: 2, kind: input, shape index: {}]
  %s3 = inlined_call_operand.vmem [shape: f32[2,2,16,8], index: 3, kind: input, shape index: {}]
  %s4 = inlined_call_operand.vmem [shape: f32[2,4,8,8], index: 4, kind: output, shape index: {}]
  %s5 = sld [smem:[#allocation0]]
  $region57: #{causal_self_attention_forward.4} parent=0
    _
  %s7 = ssub.s32 1, %s5
  %s8 = scalar_select 0, %s7, %s5
  %9 = sst [smem:[#allocation6]] %s0
  loop: start=0, step=1, limit=6
  $region2: #{causal_self_attention_forward.4} parent=0 // loop_pre_header
    _
  $region3: #{causal_self_attention_forward.4} parent=0 // loop_header
    %s11 = sphi 0, %s15
    %p12 = scmp.ge.s32.totalorder %s11, 6
    %s18 = sphi 0, %s37
    %s19 = sphi 0, %s33
    %s20 = sphi 0, %s29
    %s21 = sphi 0, %s18
    %s22 = sphi 0, %s19
    %s23 = sphi 0, %s20
    %s24 = sphi 0, %s21
    %s25 = sphi 0, %s22
    %s26 = sphi 0, %s23
    %s42 = sphi 0, %s44
    %s45 = sphi 0, %s42
    %s46 = sphi 0, %s45
    %s62 = sphi 0, %s46
    %s72 = sphi 0, %s74
    %s75 = sphi 0, %s72
    %s76 = sphi 0, %s75
    %s92 = sphi 0, %s76
    %s102 = sphi 0, %s104
    %s105 = sphi 0, %s102
    %s106 = sphi 0, %s105
    %s122 = sphi 0, %s106
    %s130 = sphi 0, %s132
    %s133 = sphi 0, %s130
    %s134 = sphi 0, %s133
    %s150 = sphi 0, %s134
  $region4: #{causal_self_attention_forward.4} parent=0 // loop_header_branch
    %14 = sbr.rel (%p12) target = $region8
  $region5: #{causal_self_attention_forward.4} parent=0 // loop_body
    %s16 = ssub.s32 %s11, 1
    %s17 = ssub.s32 %s11, 2
    %s27 = sadd.s32 1, %s20
    %p28 = scmp.ge.s32.totalorder %s27, 1
    %s29 = scalar_select %p28, 0, %s27
    %s30 = sadd.s32 1, %s19
    %s31 = scalar_select %p28, %s30, %s19
    %p32 = scmp.ge.s32.totalorder %s31, 2
    %s33 = scalar_select %p32, 0, %s31
    %s34 = sadd.s32 1, %s18
    %s35 = scalar_select %p32, %s34, %s18
    %p36 = scmp.ge.s32.totalorder %s35, 2
    %s37 = scalar_select %p36, 0, %s35
    %s38 = ssub.s32 %s18, %s37
    %s39 = ssub.s32 %s19, %s33
    %s40 = sor.u32 %s38, %s39
    %p41 = scmp.eq.s32.totalorder %s40, 0
    %s43 = sadd.s32 %s42, 1
    %s44 = scalar_select %p41, %s42, %s43
    %p47 = pneg %p41
    %p48 = scmp.eq.s32.totalorder %s11, 3
    %p49 = por %p47, %p48
    %p50 = scmp.ne.s32.totalorder %s42, %s45
    %p51 = scmp.eq.s32.totalorder %s11, 0
    %p52 = por %p50, %p51
    %p53 = scmp.ne.s32.totalorder %s42, %s45
    %p54 = scmp.eq.s32.totalorder %s16, 3
    %p55 = por %p53, %p54
    %p56 = scmp.ne.s32.totalorder %s45, %s46
    %p57 = scmp.eq.s32.totalorder %s16, 0
    %p58 = por %p56, %p57
    %p59 = scmp.ne.s32.totalorder %s45, %s46
    %p60 = scmp.eq.s32.totalorder %s17, 3
    %p61 = por %p59, %p60
    %p63 = scmp.ne.s32.totalorder %s46, %s62
    %p64 = scmp.eq.s32.totalorder %s17, 0
    %p65 = por %p63, %p64
    %s66 = ssub.s32 %s18, %s37
    %s67 = ssub.s32 %s19, %s33
    %s68 = sor.u32 %s66, %s67
    %s69 = ssub.s32 %s20, %s29
    %s70 = sor.u32 %s68, %s69
    %p71 = scmp.eq.s32.totalorder %s70, 0
    %s73 = sadd.s32 %s72, 1
    %s74 = scalar_select %p71, %s72, %s73
    %p77 = pneg %p71
    %p78 = scmp.eq.s32.totalorder %s11, 3
    %p79 = por %p77, %p78
    %p80 = scmp.ne.s32.totalorder %s72, %s75
    %p81 = scmp.eq.s32.totalorder %s11, 0
    %p82 = por %p80, %p81
    %p83 = scmp.ne.s32.totalorder %s72, %s75
    %p84 = scmp.eq.s32.totalorder %s16, 3
    %p85 = por %p83, %p84
    %p86 = scmp.ne.s32.totalorder %s75, %s76
    %p87 = scmp.eq.s32.totalorder %s16, 0
    %p88 = por %p86, %p87
    %p89 = scmp.ne.s32.totalorder %s75, %s76
    %p90 = scmp.eq.s32.totalorder %s17, 3
    %p91 = por %p89, %p90
    %p93 = scmp.ne.s32.totalorder %s76, %s92
    %p94 = scmp.eq.s32.totalorder %s17, 0
    %p95 = por %p93, %p94
    %s96 = ssub.s32 %s18, %s37
    %s97 = ssub.s32 %s19, %s33
    %s98 = sor.u32 %s96, %s97
    %s99 = ssub.s32 %s20, %s29
    %s100 = sor.u32 %s98, %s99
    %p101 = scmp.eq.s32.totalorder %s100, 0
    %s103 = sadd.s32 %s102, 1
    %s104 = scalar_select %p101, %s102, %s103
    %p107 = pneg %p101
    %p108 = scmp.eq.s32.totalorder %s11, 3
    %p109 = por %p107, %p108
    %p110 = scmp.ne.s32.totalorder %s102, %s105
    %p111 = scmp.eq.s32.totalorder %s11, 0
    %p112 = por %p110, %p111
    %p113 = scmp.ne.s32.totalorder %s102, %s105
    %p114 = scmp.eq.s32.totalorder %s16, 3
    %p115 = por %p113, %p114
    %p116 = scmp.ne.s32.totalorder %s105, %s106
    %p117 = scmp.eq.s32.totalorder %s16, 0
    %p118 = por %p116, %p117
    %p119 = scmp.ne.s32.totalorder %s105, %s106
    %p120 = scmp.eq.s32.totalorder %s17, 3
    %p121 = por %p119, %p120
    %p123 = scmp.ne.s32.totalorder %s106, %s122
    %p124 = scmp.eq.s32.totalorder %s17, 0
    %p125 = por %p123, %p124
    %s126 = ssub.s32 %s18, %s37
    %s127 = ssub.s32 %s19, %s33
    %s128 = sor.u32 %s126, %s127
    %p129 = scmp.eq.s32.totalorder %s128, 0
    %s131 = sadd.s32 %s130, 1
    %s132 = scalar_select %p129, %s130, %s131
    %p135 = pneg %p129
    %p136 = scmp.eq.s32.totalorder %s11, 3
    %p137 = por %p135, %p136
    %p138 = scmp.ne.s32.totalorder %s130, %s133
    %p139 = scmp.eq.s32.totalorder %s11, 0
    %p140 = por %p138, %p139
    %p141 = scmp.ne.s32.totalorder %s130, %s133
    %p142 = scmp.eq.s32.totalorder %s16, 3
    %p143 = por %p141, %p142
    %p144 = scmp.ne.s32.totalorder %s133, %s134
    %p145 = scmp.eq.s32.totalorder %s16, 0
    %p146 = por %p144, %p145
    %p147 = scmp.ne.s32.totalorder %s133, %s134
    %p148 = scmp.eq.s32.totalorder %s17, 3
    %p149 = por %p147, %p148
    %p151 = scmp.ne.s32.totalorder %s134, %s150
    %p152 = scmp.eq.s32.totalorder %s17, 0
    %p153 = por %p151, %p152
    %p154 = scmp.le.s32.totalorder 1, %s11
    %p155 = scmp.lt.s32.totalorder %s11, 5
    %p156 = pnand %p154, %p155
    %p157 = pneg %p156
    // Predicated region
    $region9: #{causal_self_attention_forward.4} parent=5 // pred_check
      _
    $region10: #{causal_self_attention_forward.4} parent=5 // pred_check_branch
      %159 = sbr.rel (%p156) target = $region12
    $region11: #{causal_self_attention_forward.4} parent=5 // pred_region
      %s160 = ssub.s32 %s11, 1
    $region12: #{causal_self_attention_forward.4} parent=5 // pred_fallthru
      _
    %p161 = scmp.lt.s32.totalorder %s11, 4
    // Predicated region
    $region13: #{causal_self_attention_forward.4} parent=5 // pred_check
      %p162 = pneg %p161
    $region14: #{causal_self_attention_forward.4} parent=5 // pred_check_branch
      %164 = sbr.rel (%p162) target = $region16
    $region15: #{causal_self_attention_forward.4} parent=5 // pred_region
      // Predicated region
      $region17: #{causal_self_attention_forward.4} parent=15 // pred_check
        %p165 = pneg %p52
      $region18: #{causal_self_attention_forward.4} parent=15 // pred_check_branch
        %167 = sbr.rel (%p165) target = $region20
      $region19: #{causal_self_attention_forward.4} parent=15 // pred_region
        %s168 = smul.u32 2, %s19
        %p169 = scmp.lt.s32.totalorder %s18, 1
        %s170 = scalar_select %p169, %s18, 1
        %p171 = scmp.lt.s32.totalorder %s168, 3
        %s172 = scalar_select %p171, %s168, 3
        %s173 = smul.addr %s170, 4
        %s174 = sadd.s32 %s172, %s173
        %s175 = smul.addr %s174, 8
        %s176 = scalar_lea.vmem %s1, %s175
        %s177 = smul.u32 2, %s19
      $region20: #{causal_self_attention_forward.4} parent=15 // pred_fallthru
        _
      // Predicated region
      $region21: #{causal_self_attention_forward.4} parent=15 // pred_check
        %p178 = pneg %p82
      $region22: #{causal_self_attention_forward.4} parent=15 // pred_check_branch
        %180 = sbr.rel (%p178) target = $region24
      $region23: #{causal_self_attention_forward.4} parent=15 // pred_region
        %s181 = smul.u32 2, %s20
        %p182 = scmp.lt.s32.totalorder %s18, 1
        %s183 = scalar_select %p182, %s18, 1
        %p184 = scmp.lt.s32.totalorder %s19, 1
        %s185 = scalar_select %p184, %s19, 1
        %p186 = scmp.lt.s32.totalorder %s181, 1
        %s187 = scalar_select %p186, %s181, 1
        %s188 = smul.addr %s185, 2
        %s189 = sadd.s32 %s187, %s188
        %s190 = smul.addr %s183, 4
        %s191 = sadd.s32 %s189, %s190
        %s192 = smul.addr %s191, 8
        %s193 = scalar_lea.vmem %s2, %s192
        %s194 = smul.u32 2, %s20
      $region24: #{causal_self_attention_forward.4} parent=15 // pred_fallthru
        _
      // Predicated region
      $region25: #{causal_self_attention_forward.4} parent=15 // pred_check
        %p195 = pneg %p112
      $region26: #{causal_self_attention_forward.4} parent=15 // pred_check_branch
        %197 = sbr.rel (%p195) target = $region28
      $region27: #{causal_self_attention_forward.4} parent=15 // pred_region
        %s198 = smul.u32 2, %s20
        %p199 = scmp.lt.s32.totalorder %s18, 1
        %s200 = scalar_select %p199, %s18, 1
        %p201 = scmp.lt.s32.totalorder %s19, 1
        %s202 = scalar_select %p201, %s19, 1
        %p203 = scmp.lt.s32.totalorder %s198, 1
        %s204 = scalar_select %p203, %s198, 1
        %s205 = smul.addr %s202, 2
        %s206 = sadd.s32 %s204, %s205
        %s207 = smul.addr %s200, 4
        %s208 = sadd.s32 %s206, %s207
        %s209 = smul.addr %s208, 8
        %s210 = scalar_lea.vmem %s3, %s209
        %s211 = smul.u32 2, %s20
      $region28: #{causal_self_attention_forward.4} parent=15 // pred_fallthru
        _
    $region16: #{causal_self_attention_forward.4} parent=5 // pred_fallthru
      _
    %p212 = scmp.le.s32.totalorder 1, %s11
    %p213 = scmp.lt.s32.totalorder %s11, 5
    %p214 = pnand %p212, %p213
    %p215 = pneg %p214
    // Predicated region
    $region29: #{causal_self_attention_forward.4} parent=5 // pred_check
      _
    $region30: #{causal_self_attention_forward.4} parent=5 // pred_check_branch
      %217 = sbr.rel (%p214) target = $region32
    $region31: #{causal_self_attention_forward.4} parent=5 // pred_region
      %s218 = ssub.s32 %s11, 1
      %s219 = smul.u32 2, %s22
      %p220 = scmp.lt.s32.totalorder %s21, 1
      %s221 = scalar_select %p220, %s21, 1
      %p222 = scmp.lt.s32.totalorder %s219, 3
      %s223 = scalar_select %p222, %s219, 3
      %s224 = smul.addr %s221, 4
      %s225 = sadd.s32 %s223, %s224
      %s226 = smul.addr %s225, 8
      %s227 = scalar_lea.vmem %s1, %s226
      %p228 = pneg %p58
      %p229 = pneg %p55
      %s230 = smul.u32 2, %s23
      %p231 = scmp.lt.s32.totalorder %s21, 1
      %s232 = scalar_select %p231, %s21, 1
      %p233 = scmp.lt.s32.totalorder %s22, 1
      %s234 = scalar_select %p233, %s22, 1
      %p235 = scmp.lt.s32.totalorder %s230, 1
      %s236 = scalar_select %p235, %s230, 1
      %s237 = smul.addr %s234, 2
      %s238 = sadd.s32 %s236, %s237
      %s239 = smul.addr %s232, 4
      %s240 = sadd.s32 %s238, %s239
      %s241 = smul.addr %s240, 8
      %s242 = scalar_lea.vmem %s2, %s241
      %p243 = pneg %p88
      %p244 = pneg %p85
      %s245 = smul.u32 2, %s23
      %p246 = scmp.lt.s32.totalorder %s21, 1
      %s247 = scalar_select %p246, %s21, 1
      %p248 = scmp.lt.s32.totalorder %s22, 1
      %s249 = scalar_select %p248, %s22, 1
      %p250 = scmp.lt.s32.totalorder %s245, 1
      %s251 = scalar_select %p250, %s245, 1
      %s252 = smul.addr %s249, 2
      %s253 = sadd.s32 %s251, %s252
      %s254 = smul.addr %s247, 4
      %s255 = sadd.s32 %s253, %s254
      %s256 = smul.addr %s255, 8
      %s257 = scalar_lea.vmem %s3, %s256
      %p258 = pneg %p118
      %p259 = pneg %p115
      %p260 = pneg %p146
      %p261 = pneg %p143
      %s262 = smul.u32 2, %s22
      %p263 = scmp.lt.s32.totalorder %s21, 1
      %s264 = scalar_select %p263, %s21, 1
      %p265 = scmp.lt.s32.totalorder %s262, 3
      %s266 = scalar_select %p265, %s262, 3
      %s267 = smul.addr %s264, 4
      %s268 = sadd.s32 %s266, %s267
      %s269 = smul.addr %s268, 8
      %s270 = scalar_lea.vmem %s4, %s269
      %s271 = smul.u32 2, %s22
      %p272 = scmp.lt.s32.totalorder %s21, 1
      %s273 = scalar_select %p272, %s21, 1
      %p274 = scmp.lt.s32.totalorder %s271, 3
      %s275 = scalar_select %p274, %s271, 3
      %s276 = smul.addr %s273, 4
      %s277 = sadd.s32 %s275, %s276
      %s278 = smul.addr %s277, 8
      %s279 = scalar_lea.vmem %s1, %s278
      %s280 = smul.u32 2, %s22
      %s281 = smul.u32 2, %s23
      %p282 = scmp.lt.s32.totalorder %s21, 1
      %s283 = scalar_select %p282, %s21, 1
      %p284 = scmp.lt.s32.totalorder %s22, 1
      %s285 = scalar_select %p284, %s22, 1
      %p286 = scmp.lt.s32.totalorder %s281, 1
      %s287 = scalar_select %p286, %s281, 1
      %s288 = smul.addr %s285, 2
      %s289 = sadd.s32 %s287, %s288
      %s290 = smul.addr %s283, 4
      %s291 = sadd.s32 %s289, %s290
      %s292 = smul.addr %s291, 8
      %s293 = scalar_lea.vmem %s2, %s292
      %s294 = smul.u32 2, %s23
      %s295 = smul.u32 2, %s23
      %p296 = scmp.lt.s32.totalorder %s21, 1
      %s297 = scalar_select %p296, %s21, 1
      %p298 = scmp.lt.s32.totalorder %s22, 1
      %s299 = scalar_select %p298, %s22, 1
      %p300 = scmp.lt.s32.totalorder %s295, 1
      %s301 = scalar_select %p300, %s295, 1
      %s302 = smul.addr %s299, 2
      %s303 = sadd.s32 %s301, %s302
      %s304 = smul.addr %s297, 4
      %s305 = sadd.s32 %s303, %s304
      %s306 = smul.addr %s305, 8
      %s307 = scalar_lea.vmem %s3, %s306
      %s308 = smul.u32 2, %s23
      %s309 = smul.u32 2, %s22
      %p310 = scmp.lt.s32.totalorder %s21, 1
      %s311 = scalar_select %p310, %s21, 1
      %p312 = scmp.lt.s32.totalorder %s309, 3
      %s313 = scalar_select %p312, %s309, 3
      %s314 = smul.addr %s311, 4
      %s315 = sadd.s32 %s313, %s314
      %s316 = smul.addr %s315, 8
      %s317 = scalar_lea.vmem %s4, %s316
      %s318 = smul.u32 2, %s22
      %s319 = sld [smem:[#allocation6]]
      %s320 = smul.u32 %s23, 16
      %p321 = scmp.eq.s32.totalorder %s23, 0
      // Predicated region
      $region33: #{causal_self_attention_forward.4} parent=31 // pred_check
        %p322 = pneg %p321
      $region34: #{causal_self_attention_forward.4} parent=31 // pred_check_branch
        %324 = sbr.rel (%p322) target = $region36
      $region35: #{causal_self_attention_forward.4} parent=31 // pred_region
        %vm325 = vcmask 7168
        %326 = vst.msk [vmem:[#allocation2] sm:$0xff] %vm325, -1e+30
        %327 = vst.msk [vmem:[#allocation2 + $0x8] sm:$0xff] %vm325, -1e+30
        %328 = vst.msk [vmem:[#allocation3] sm:$0xff] %vm325, 0.0
        %329 = vst.msk [vmem:[#allocation3 + $0x8] sm:$0xff] %vm325, 0.0
        %vm330 = vcmask 64512
        %331 = vst.msk [vmem:[#allocation4] sm:$0xff] %vm330, 0.0
        %332 = vst.msk [vmem:[#allocation4 + $0x8] sm:$0xff] %vm330, 0.0
      $region36: #{causal_self_attention_forward.4} parent=31 // pred_fallthru
        _
      %s333 = sadd.s32 %s319, 7
      %p334 = scmp.le.s32.totalorder %s320, %s333
      // Predicated region
      $region37: #{causal_self_attention_forward.4} parent=31 // pred_check
        %p335 = pneg %p334
      $region38: #{causal_self_attention_forward.4} parent=31 // pred_check_branch
        %337 = sbr.rel (%p335) target = $region40
      $region39: #{causal_self_attention_forward.4} parent=31 // pred_region
        %v338 = vld [vmem:[%s279] sm:$0xff]
        %v339 = vld [vmem:[%s279 + $0x8] sm:$0xff]
        %v340 = vmul.f32 %v338, 0.35355338
        %v341 = vmul.f32 %v339, 0.35355338
        %v342 = vld [vmem:[%s293] sm:$0xff]
        %v343 = vld [vmem:[%s293 + $0x8] sm:$0xff]
        %v344 = vld [vmem:[%s307] sm:$0xff]
        %v345 = vld [vmem:[%s307 + $0x8] sm:$0xff]
        %vm346 = vcmask 64512
        %v348 = vsel %vm346, %v340, 0
        %v351 = vsel %vm346, %v341, 0
        %v354 = vsel %vm346, %v342, 0
        %v357 = vsel %vm346, %v343, 0
        %359 = vmatprep.subr.mxu0 0.0
        %360 = vmatpush1.xpose.msra.mxu0 %v354
        %361 = vmatprep.subr.mxu0 0.0
        %362 = vmatpush1.xpose.msra.mxu0 %v357
        %363 = vmatprep.subr.mxu0 0.0
        %364 = vmatpush1.xpose.msra.mxu0 0.0
        %365 = vmatprep.subr.mxu0 0.0
        %366 = vmatpush1.xpose.msra.mxu0 0.0
        %367 = vmatprep.subr.mxu0 0.0
        %368 = vmatpush1.xpose.msra.mxu0 0.0
        %369 = vmatprep.subr.mxu0 0.0
        %370 = vmatpush1.xpose.msra.mxu0 0.0
        %371 = vmatprep.subr.mxu0 0.0
        %372 = vmatpush1.xpose.msra.mxu0 0.0
        %373 = vmatprep.subr.mxu0 0.0
        %374 = vmatpush1.xpose.msra.mxu0 0.0
        %375 = vmatprep.subr.mxu0 0.0
        %376 = vmatpush1.xpose.msra.mxu0 0.0
        %377 = vmatprep.subr.mxu0 0.0
        %378 = vmatpush1.xpose.msra.mxu0 0.0
        %379 = vmatprep.subr.mxu0 0.0
        %380 = vmatpush1.xpose.msra.mxu0 0.0
        %381 = vmatprep.subr.mxu0 0.0
        %382 = vmatpush1.xpose.msra.mxu0 0.0
        %383 = vmatprep.subr.mxu0 0.0
        %384 = vmatpush1.xpose.msra.mxu0 0.0
        %385 = vmatprep.subr.mxu0 0.0
        %386 = vmatpush1.xpose.msra.mxu0 0.0
        %387 = vmatprep.subr.mxu0 0.0
        %388 = vmatpush1.xpose.msra.mxu0 0.0
        %389 = vmatprep.subr.mxu0 0.0
        %390 = vmatpush1.xpose.msra.mxu0 0.0
        %391 = vmatprep.subr.mxu0 0.0
        %392 = vmatpush1.xpose.msra.mxu0 0.0
        %393 = vmatprep.subr.mxu0 0.0
        %394 = vmatpush1.xpose.msra.mxu0 0.0
        %395 = vmatprep.subr.mxu0 0.0
        %396 = vmatpush1.xpose.msra.mxu0 0.0
        %397 = vmatprep.subr.mxu0 0.0
        %398 = vmatpush1.xpose.msra.mxu0 0.0
        %399 = vmatprep.subr.mxu0 0.0
        %400 = vmatpush1.xpose.msra.mxu0 0.0
        %401 = vmatprep.subr.mxu0 0.0
        %402 = vmatpush1.xpose.msra.mxu0 0.0
        %403 = vmatprep.subr.mxu0 0.0
        %404 = vmatpush1.xpose.msra.mxu0 0.0
        %405 = vmatprep.subr.mxu0 0.0
        %406 = vmatpush1.xpose.msra.mxu0 0.0
        %407 = vmatprep.subr.mxu0 0.0
        %408 = vmatpush1.xpose.msra.mxu0 0.0
        %409 = vmatprep.subr.mxu0 0.0
        %410 = vmatpush1.xpose.msra.mxu0 0.0
        %411 = vmatprep.subr.mxu0 0.0
        %412 = vmatpush1.xpose.msra.mxu0 0.0
        %413 = vmatprep.subr.mxu0 0.0
        %414 = vmatpush1.xpose.msra.mxu0 0.0
        %415 = vmatprep.subr.mxu0 0.0
        %416 = vmatpush1.xpose.msra.mxu0 0.0
        %417 = vmatprep.subr.mxu0 0.0
        %418 = vmatpush1.xpose.msra.mxu0 0.0
        %419 = vmatprep.subr.mxu0 0.0
        %420 = vmatpush1.xpose.msra.mxu0 0.0
        %421 = vmatprep.subr.mxu0 0.0
        %422 = vmatpush1.xpose.msra.mxu0 0.0
        %423 = vmatprep.mubr.f32.mxu0 0.0
        %424 = vmatmul.mubr.f32.gmra.mrb[0].mxu0 %v348
        %v425 = vpop.f32.mrb[0].mxu0
        %v426 = vadd.f32 0.0, %v425
        %v427 = vpop.f32.mrb[0].mxu0
        %428 = vmatprep.mubr.f32.mxu0 0.0
        %429 = vmatmul.mubr.f32.gmra.mrb[0].mxu0 %v351
        %v430 = vpop.f32.mrb[0].mxu0
        %v431 = vadd.f32 0.0, %v430
        %v432 = vpop.f32.mrb[0].mxu0
        %433 = vdwg.mxu0
        %v434 = vlaneseq
        %v435 = vshrl.u32 %v434, 7
        %v436 = vadd.s32 %v435, 8
        %v437 = vlaneseq
        %v438 = vand.u32 %v437, 127
        %vm439 = vcmp.lt.s32.totalorder %v435, 0
        %v440 = vsub.s32 0, %v435
        %v441 = vsel %vm439, %v440, %v435
        %v442 = vshrl.u32 %v441, 3
        %v443 = vand.u32 %v441, 7
        %v444 = vsub.s32 0, %v443
        %v445 = vsel %vm439, %v444, %v443
        %vm446 = vcmp.lt.s32.totalorder %v436, 0
        %v447 = vsub.s32 0, %v436
        %v448 = vsel %vm446, %v447, %v436
        %v449 = vshrl.u32 %v448, 3
        %v450 = vand.u32 %v448, 7
        %v451 = vsub.s32 0, %v450
        %v452 = vsel %vm446, %v451, %v450
        %vm453 = vcmp.ne.s32.totalorder %v445, 0
        %vm454 = vcmp.ne.s32.totalorder %v452, 0
        %vm455 = vcmp.lt.s32.totalorder %v445, 0
        %vm456 = vcmp.lt.s32.totalorder %v452, 0
        %vm457 = vmand %vm455, %vm453
        %vm458 = vmand %vm456, %vm454
        %v459 = vadd.s32 %v445, 8
        %v460 = vadd.s32 %v452, 8
        %v461 = vsel %vm457, %v459, %v445
        %v462 = vsel %vm458, %v460, %v452
        %v463 = vstv %s319
        %v464 = vadd.s32 %v463, %v461
        %v465 = vadd.s32 %v463, %v462
        %v466 = vstv %s320
        %v467 = vadd.s32 %v466, %v438
        %vm468 = vcmp.le.s32.totalorder %v467, %v464
        %vm469 = vcmp.le.s32.totalorder %v467, %v465
        %v470 = vsel %vm468, %v426, -1e+30
        %v471 = vsel %vm469, %v431, -1e+30
        %v472 = vld [vmem:[#allocation2] sm:$0xff]
        %v473 = vld [vmem:[#allocation2 + $0x8] sm:$0xff]
        %vm474 = vcmask 130048
        %v475 = vsel %vm474, %v470, -inf
        %476 = vmax.xlane.f32.xlu0 %v475
        %v477 = vpop.xlane.xlu0 %476
        %v478 = vsel %vm474, %v471, -inf
        %479 = vmax.xlane.f32.xlu0 %v478
        %v480 = vpop.xlane.xlu0 %479
        %v481 = vmax.f32 %v472, %v477
        %v482 = vmax.f32 %v473, %v480
        %v483 = vsub.f32 %v472, %v481
        %v484 = vsub.f32 %v473, %v482
        %v485 = vmul.f32 %v483, 1.442695
        %v486 = vpow.pop %v485
        %v487 = vmul.f32 %v484, 1.442695
        %v488 = vpow.pop %v487
        %490 = vset.pattern.permute.xlu0 0
        %491 = vperm.xlu0 %490, %v481
        %v492 = vpop.permute.xlu0 %491
        %495 = vset.pattern.permute.xlu0 0
        %496 = vperm.xlu0 %495, %v482
        %v497 = vpop.permute.xlu0 %496
        %v499 = vsub.f32 %v470, %v492
        %v500 = vsub.f32 %v471, %v497
        %v501 = vmul.f32 %v499, 1.442695
        %v502 = vpow.pop %v501
        %v503 = vmul.f32 %v500, 1.442695
        %v504 = vpow.pop %v503
        %v505 = vld [vmem:[#allocation3] sm:$0xff]
        %v506 = vld [vmem:[#allocation3 + $0x8] sm:$0xff]
        %v507 = vmul.f32 %v486, %v505
        %v508 = vmul.f32 %v488, %v506
        %v509 = vsel %vm474, %v502, 0.0
        %510 = vadd.xlane.f32.xlu0 %v509
        %v511 = vpop.xlane.xlu0 %510
        %v512 = vsel %vm474, %v504, 0.0
        %513 = vadd.xlane.f32.xlu0 %v512
        %v514 = vpop.xlane.xlu0 %513
        %v515 = vadd.f32 %v507, %v511
        %v516 = vadd.f32 %v508, %v514
        %vm517 = vcmask 7168
        %518 = vst.msk [vmem:[#allocation3] sm:$0xff] %vm517, %v515
        %519 = vst.msk [vmem:[#allocation3 + $0x8] sm:$0xff] %vm517, %v516
        %v520 = vld [vmem:[#allocation4] sm:$0xff]
        %v521 = vld [vmem:[#allocation4 + $0x8] sm:$0xff]
        %523 = vset.pattern.permute.xlu0 0
        %524 = vperm.xlu0 %523, %v486
        %v525 = vpop.permute.xlu0 %524
        %528 = vset.pattern.permute.xlu0 0
        %529 = vperm.xlu0 %528, %v488
        %v530 = vpop.permute.xlu0 %529
        %v532 = vmul.f32 %v525, %v520
        %v533 = vmul.f32 %v530, %v521
        %v535 = vsel %vm474, %v502, 0
        %v538 = vsel %vm474, %v504, 0
        %540 = vmatprep.subr.mxu0 0.0
        %541 = vmatpush1.msra.mxu0 %v344
        %542 = vmatprep.subr.mxu0 0.0
        %543 = vmatpush1.msra.mxu0 %v345
        %544 = vmatprep.subr.mxu0 0.0
        %545 = vmatpush1.msra.mxu0 0.0
        %546 = vmatprep.subr.mxu0 0.0
        %547 = vmatpush1.msra.mxu0 0.0
        %548 = vmatprep.subr.mxu0 0.0
        %549 = vmatpush1.msra.mxu0 0.0
        %550 = vmatprep.subr.mxu0 0.0
        %551 = vmatpush1.msra.mxu0 0.0
        %552 = vmatprep.subr.mxu0 0.0
        %553 = vmatpush1.msra.mxu0 0.0
        %554 = vmatprep.subr.mxu0 0.0
        %555 = vmatpush1.msra.mxu0 0.0
        %556 = vmatprep.subr.mxu0 0.0
        %557 = vmatpush1.msra.mxu0 0.0
        %558 = vmatprep.subr.mxu0 0.0
        %559 = vmatpush1.msra.mxu0 0.0
        %560 = vmatprep.subr.mxu0 0.0
        %561 = vmatpush1.msra.mxu0 0.0
        %562 = vmatprep.subr.mxu0 0.0
        %563 = vmatpush1.msra.mxu0 0.0
        %564 = vmatprep.subr.mxu0 0.0
        %565 = vmatpush1.msra.mxu0 0.0
        %566 = vmatprep.subr.mxu0 0.0
        %567 = vmatpush1.msra.mxu0 0.0
        %568 = vmatprep.subr.mxu0 0.0
        %569 = vmatpush1.msra.mxu0 0.0
        %570 = vmatprep.subr.mxu0 0.0
        %571 = vmatpush1.msra.mxu0 0.0
        %572 = vmatprep.subr.mxu0 0.0
        %573 = vmatpush1.msra.mxu0 0.0
        %574 = vmatprep.subr.mxu0 0.0
        %575 = vmatpush1.msra.mxu0 0.0
        %576 = vmatprep.subr.mxu0 0.0
        %577 = vmatpush1.msra.mxu0 0.0
        %578 = vmatprep.subr.mxu0 0.0
        %579 = vmatpush1.msra.mxu0 0.0
        %580 = vmatprep.subr.mxu0 0.0
        %581 = vmatpush1.msra.mxu0 0.0
        %582 = vmatprep.subr.mxu0 0.0
        %583 = vmatpush1.msra.mxu0 0.0
        %584 = vmatprep.subr.mxu0 0.0
        %585 = vmatpush1.msra.mxu0 0.0
        %586 = vmatprep.subr.mxu0 0.0
        %587 = vmatpush1.msra.mxu0 0.0
        %588 = vmatprep.subr.mxu0 0.0
        %589 = vmatpush1.msra.mxu0 0.0
        %590 = vmatprep.subr.mxu0 0.0
        %591 = vmatpush1.msra.mxu0 0.0
        %592 = vmatprep.subr.mxu0 0.0
        %593 = vmatpush1.msra.mxu0 0.0
        %594 = vmatprep.subr.mxu0 0.0
        %595 = vmatpush1.msra.mxu0 0.0
        %596 = vmatprep.subr.mxu0 0.0
        %597 = vmatpush1.msra.mxu0 0.0
        %598 = vmatprep.subr.mxu0 0.0
        %599 = vmatpush1.msra.mxu0 0.0
        %600 = vmatprep.subr.mxu0 0.0
        %601 = vmatpush1.msra.mxu0 0.0
        %602 = vmatprep.subr.mxu0 0.0
        %603 = vmatpush1.msra.mxu0 0.0
        %604 = vmatprep.mubr.f32.mxu0 0.0
        %605 = vmatmul.mubr.f32.gmra.mrb[0].mxu0 %v535
        %v606 = vpop.f32.mrb[0].mxu0
        %v607 = vadd.f32 0.0, %v606
        %v608 = vpop.f32.mrb[0].mxu0
        %609 = vmatprep.mubr.f32.mxu0 0.0
        %610 = vmatmul.mubr.f32.gmra.mrb[0].mxu0 %v538
        %v611 = vpop.f32.mrb[0].mxu0
        %v612 = vadd.f32 0.0, %v611
        %v613 = vpop.f32.mrb[0].mxu0
        %614 = vdwg.mxu0
        %v615 = vadd.f32 %v532, %v607
        %v616 = vadd.f32 %v533, %v612
        %617 = vst.msk [vmem:[#allocation4] sm:$0xff] %vm346, %v615
        %618 = vst.msk [vmem:[#allocation4 + $0x8] sm:$0xff] %vm346, %v616
        %619 = vst.msk [vmem:[#allocation2] sm:$0xff] %vm517, %v481
        %620 = vst.msk [vmem:[#allocation2 + $0x8] sm:$0xff] %vm517, %v482
      $region40: #{causal_self_attention_forward.4} parent=31 // pred_fallthru
        _
      // Predicated region
      $region41: #{causal_self_attention_forward.4} parent=31 // pred_check
        %p621 = pneg %p321
      $region42: #{causal_self_attention_forward.4} parent=31 // pred_check_branch
        %623 = sbr.rel (%p621) target = $region44
      $region43: #{causal_self_attention_forward.4} parent=31 // pred_region
        %v624 = vld [vmem:[#allocation4] sm:$0xff]
        %v625 = vld [vmem:[#allocation4 + $0x8] sm:$0xff]
        %v626 = vld [vmem:[#allocation3] sm:$0xff]
        %v627 = vld [vmem:[#allocation3 + $0x8] sm:$0xff]
        %v628 = vrcp.pop %v626
        %v629 = vrcp.pop %v627
        %631 = vset.pattern.permute.xlu0 0
        %632 = vperm.xlu0 %631, %v628
        %v633 = vpop.permute.xlu0 %632
        %636 = vset.pattern.permute.xlu0 0
        %637 = vperm.xlu0 %636, %v629
        %v638 = vpop.permute.xlu0 %637
        %v640 = vmul.f32 %v624, %v633
        %v641 = vmul.f32 %v625, %v638
        %vm642 = vcmask 64512
        %643 = vst.msk [vmem:[%s317] sm:$0xff] %vm642, %v640
        %644 = vst.msk [vmem:[%s317 + $0x8] sm:$0xff] %vm642, %v641
      $region44: #{causal_self_attention_forward.4} parent=31 // pred_fallthru
        _
      %s645 = smul.u32 2, %s22
      %p646 = scmp.lt.s32.totalorder %s21, 1
      %s647 = scalar_select %p646, %s21, 1
      %p648 = scmp.lt.s32.totalorder %s645, 3
      %s649 = scalar_select %p648, %s645, 3
      %s650 = smul.addr %s647, 4
      %s651 = sadd.s32 %s649, %s650
      %s652 = smul.addr %s651, 8
      %s653 = scalar_lea.vmem %s4, %s652
      // Predicated region
      $region45: #{causal_self_attention_forward.4} parent=31 // pred_check
        %p654 = pneg %p143
      $region46: #{causal_self_attention_forward.4} parent=31 // pred_check_branch
        %656 = sbr.rel (%p654) target = $region48
      $region47: #{causal_self_attention_forward.4} parent=31 // pred_region
        %s657 = smul.u32 2, %s22
      $region48: #{causal_self_attention_forward.4} parent=31 // pred_fallthru
        _
    $region32: #{causal_self_attention_forward.4} parent=5 // pred_fallthru
      _
    %p658 = scmp.le.s32.totalorder 2, %s11
    // Predicated region
    $region49: #{causal_self_attention_forward.4} parent=5 // pred_check
      %p659 = pneg %p658
    $region50: #{causal_self_attention_forward.4} parent=5 // pred_check_branch
      %661 = sbr.rel (%p659) target = $region52
    $region51: #{causal_self_attention_forward.4} parent=5 // pred_region
      %s662 = ssub.s32 %s11, 2
      // Predicated region
      $region53: #{causal_self_attention_forward.4} parent=51 // pred_check
        %p663 = pneg %p149
      $region54: #{causal_self_attention_forward.4} parent=51 // pred_check_branch
        %665 = sbr.rel (%p663) target = $region56
      $region55: #{causal_self_attention_forward.4} parent=51 // pred_region
        %s666 = smul.u32 2, %s25
        %p667 = scmp.lt.s32.totalorder %s24, 1
        %s668 = scalar_select %p667, %s24, 1
        %p669 = scmp.lt.s32.totalorder %s666, 3
        %s670 = scalar_select %p669, %s666, 3
        %s671 = smul.addr %s668, 4
        %s672 = sadd.s32 %s670, %s671
        %s673 = smul.addr %s672, 8
        %s674 = scalar_lea.vmem %s4, %s673
      $region56: #{causal_self_attention_forward.4} parent=51 // pred_fallthru
        _
    $region52: #{causal_self_attention_forward.4} parent=5 // pred_fallthru
      _
  $region6: #{causal_self_attention_forward.4} parent=0 // loop_footer
    %s15 = sadd.s32 1, %s11
  $region7: #{causal_self_attention_forward.4} parent=0 // loop_footer_branch
    %10 = sbr.rel target = $region3
  $region8: #{causal_self_attention_forward.4} parent=0 // loop_exit
    _

// kernel: causal_self_attention_forward.5
$region0: #{causal_self_attention_forward.5}
  #allocation0 [shape = 'u32[]', space=smem, size = 0x4, offset = 0x4, fixed_abs, tag = 'smem constant byte address 0x4 - core index']
  #allocation1 [shape = 'u32[144,128]{1,0:T(1,128)}', space=vmem, size = 0x12000, scoped, tag = 'internal scratch']
  #allocation2 [shape = 'f32[16,32]{1,0:T(8,128)}', space=vmem, size = 0x2000, scoped, tag = 'scratch operand']
  %s0 = inlined_call_operand.vmem [shape: f32[16,32], index: 0, kind: input, shape index: {}]
  %s1 = inlined_call_operand.vmem [shape: f32[32,32], index: 1, kind: input, shape index: {}]
  %s2 = inlined_call_operand.hbm [shape: f32[16,32], index: 2, kind: output, shape index: {}]
  %s3 = sld [smem:[#allocation0]]
  $region26: #{causal_self_attention_forward.5} parent=0
    _
  %s5 = ssub.s32 1, %s3
  %s6 = scalar_select 0, %s5, %s3
  $region1: #{causal_self_attention_forward.5} parent=0
    #allocation3 [shape = 'u8[8192]{0}', space=vmem, size = 0x2000, scoped, tag = 'output window, operand 0, single buffered']
    #allocation4 [shape = 's32[1]{0}', space=sflag, size = 0x4, scoped, tag = 'scoped memory for causal_self_attention_forward.5']
    %7 = vsyncpa [#allocation4], 0
    // Predicated region
    $region2: #{causal_self_attention_forward.5} parent=1 // pred_check
      _
    $region3: #{causal_self_attention_forward.5} parent=1 // pred_check_branch
      %9 = sbr.rel (0) target = $region5
    $region4: #{causal_self_attention_forward.5} parent=1 // pred_region
      _
    $region5: #{causal_self_attention_forward.5} parent=1 // pred_fallthru
      _
    // Predicated region
    $region6: #{causal_self_attention_forward.5} parent=1 // pred_check
      _
    $region7: #{causal_self_attention_forward.5} parent=1 // pred_check_branch
      %11 = sbr.rel (0) target = $region9
    $region8: #{causal_self_attention_forward.5} parent=1 // pred_region
      _
    $region9: #{causal_self_attention_forward.5} parent=1 // pred_fallthru
      _
    %p12 = scmp.eq.s32.totalorder 0, 0
    // Predicated region
    $region10: #{causal_self_attention_forward.5} parent=1 // pred_check
      %p13 = pneg %p12
    $region11: #{causal_self_attention_forward.5} parent=1 // pred_check_branch
      %15 = sbr.rel (%p13) target = $region13
    $region12: #{causal_self_attention_forward.5} parent=1 // pred_region
      %vm16 = vcmask 261120
      %17 = vst.msk [vmem:[#allocation2] sm:$0xff] %vm16, 0.0
      %18 = vst.msk [vmem:[#allocation2 + $0x8] sm:$0xff] %vm16, 0.0
    $region13: #{causal_self_attention_forward.5} parent=1 // pred_fallthru
      _
    %v19 = vld [vmem:[#allocation2] sm:$0xff]
    %v20 = vld [vmem:[#allocation2 + $0x8] sm:$0xff]
    %v21 = vld [vmem:[%s0] sm:$0xff]
    %v22 = vld [vmem:[%s0 + $0x8] sm:$0xff]
    %v23 = vld [vmem:[%s1] sm:$0xff]
    %v24 = vld [vmem:[%s1 + $0x8] sm:$0xff]
    %v25 = vld [vmem:[%s1 + $0x10] sm:$0xff]
    %v26 = vld [vmem:[%s1 + $0x18] sm:$0xff]
    %vm27 = vcmask 261120
    %v29 = vsel %vm27, %v21, 0
    %v32 = vsel %vm27, %v22, 0
    %v35 = vsel %vm27, %v23, 0
    %v38 = vsel %vm27, %v24, 0
    %v41 = vsel %vm27, %v25, 0
    %v44 = vsel %vm27, %v26, 0
    %46 = vmatprep.subr.mxu0 0.0
    %47 = vmatpush1.xpose.msra.mxu0 %v35
    %48 = vmatprep.subr.mxu0 0.0
    %49 = vmatpush1.xpose.msra.mxu0 %v38
    %50 = vmatprep.subr.mxu0 0.0
    %51 = vmatpush1.xpose.msra.mxu0 %v41
    %52 = vmatprep.subr.mxu0 0.0
    %53 = vmatpush1.xpose.msra.mxu0 %v44
    %54 = vmatprep.subr.mxu0 0.0
    %55 = vmatpush1.xpose.msra.mxu0 0.0
    %56 = vmatprep.subr.mxu0 0.0
    %57 = vmatpush1.xpose.msra.mxu0 0.0
    %58 = vmatprep.subr.mxu0 0.0
    %59 = vmatpush1.xpose.msra.mxu0 0.0
    %60 = vmatprep.subr.mxu0 0.0
    %61 = vmatpush1.xpose.msra.mxu0 0.0
    %62 = vmatprep.subr.mxu0 0.0
    %63 = vmatpush1.xpose.msra.mxu0 0.0
    %64 = vmatprep.subr.mxu0 0.0
    %65 = vmatpush1.xpose.msra.mxu0 0.0
    %66 = vmatprep.subr.mxu0 0.0
    %67 = vmatpush1.xpose.msra.mxu0 0.0
    %68 = vmatprep.subr.mxu0 0.0
    %69 = vmatpush1.xpose.msra.mxu0 0.0
    %70 = vmatprep.subr.mxu0 0.0
    %71 = vmatpush1.xpose.msra.mxu0 0.0
    %72 = vmatprep.subr.mxu0 0.0
    %73 = vmatpush1.xpose.msra.mxu0 0.0
    %74 = vmatprep.subr.mxu0 0.0
    %75 = vmatpush1.xpose.msra.mxu0 0.0
    %76 = vmatprep.subr.mxu0 0.0
    %77 = vmatpush1.xpose.msra.mxu0 0.0
    %78 = vmatprep.subr.mxu0 0.0
    %79 = vmatpush1.xpose.msra.mxu0 0.0
    %80 = vmatprep.subr.mxu0 0.0
    %81 = vmatpush1.xpose.msra.mxu0 0.0
    %82 = vmatprep.subr.mxu0 0.0
    %83 = vmatpush1.xpose.msra.mxu0 0.0
    %84 = vmatprep.subr.mxu0 0.0
    %85 = vmatpush1.xpose.msra.mxu0 0.0
    %86 = vmatprep.subr.mxu0 0.0
    %87 = vmatpush1.xpose.msra.mxu0 0.0
    %88 = vmatprep.subr.mxu0 0.0
    %89 = vmatpush1.xpose.msra.mxu0 0.0
    %90 = vmatprep.subr.mxu0 0.0
    %91 = vmatpush1.xpose.msra.mxu0 0.0
    %92 = vmatprep.subr.mxu0 0.0
    %93 = vmatpush1.xpose.msra.mxu0 0.0
    %94 = vmatprep.subr.mxu0 0.0
    %95 = vmatpush1.xpose.msra.mxu0 0.0
    %96 = vmatprep.subr.mxu0 0.0
    %97 = vmatpush1.xpose.msra.mxu0 0.0
    %98 = vmatprep.subr.mxu0 0.0
    %99 = vmatpush1.xpose.msra.mxu0 0.0
    %100 = vmatprep.subr.mxu0 0.0
    %101 = vmatpush1.xpose.msra.mxu0 0.0
    %102 = vmatprep.subr.mxu0 0.0
    %103 = vmatpush1.xpose.msra.mxu0 0.0
    %104 = vmatprep.subr.mxu0 0.0
    %105 = vmatpush1.xpose.msra.mxu0 0.0
    %106 = vmatprep.subr.mxu0 0.0
    %107 = vmatpush1.xpose.msra.mxu0 0.0
    %108 = vmatprep.subr.mxu0 0.0
    %109 = vmatpush1.xpose.msra.mxu0 0.0
    %110 = vmatprep.mubr.f32.mxu0 0.0
    %111 = vmatmul.mubr.f32.gmra.mrb[0].mxu0 %v29
    %v112 = vpop.f32.mrb[0].mxu0
    %v113 = vadd.f32 0.0, %v112
    %v114 = vpop.f32.mrb[0].mxu0
    %115 = vmatprep.mubr.f32.mxu0 0.0
    %116 = vmatmul.mubr.f32.gmra.mrb[0].mxu0 %v32
    %v117 = vpop.f32.mrb[0].mxu0
    %v118 = vadd.f32 0.0, %v117
    %v119 = vpop.f32.mrb[0].mxu0
    %120 = vdwg.mxu0
    %v121 = vadd.f32 %v19, %v113
    %v122 = vadd.f32 %v20, %v118
    %123 = vst.msk [vmem:[#allocation2] sm:$0xff] %vm27, %v121
    %124 = vst.msk [vmem:[#allocation2 + $0x8] sm:$0xff] %vm27, %v122
    // Predicated region
    $region14: #{causal_self_attention_forward.5} parent=1 // pred_check
      %p125 = pneg %p12
    $region15: #{causal_self_attention_forward.5} parent=1 // pred_check_branch
      %127 = sbr.rel (%p125) target = $region17
    $region16: #{causal_self_attention_forward.5} parent=1 // pred_region
      %v128 = vld [vmem:[#allocation2] sm:$0xff]
      %v129 = vld [vmem:[#allocation2 + $0x8] sm:$0xff]
      %130 = vst.msk [vmem:[#allocation3] sm:$0xff] %vm27, %v128
      %131 = vst.msk [vmem:[#allocation3 + $0x8] sm:$0xff] %vm27, %v129
    $region17: #{causal_self_attention_forward.5} parent=1 // pred_fallthru
      _
    // Predicated region
    $region18: #{causal_self_attention_forward.5} parent=1 // pred_check
      _
    $region19: #{causal_self_attention_forward.5} parent=1 // pred_check_branch
      %133 = sbr.rel (0) target = $region21
    $region20: #{causal_self_attention_forward.5} parent=1 // pred_region
      %s135 = ssub.s32 256, 256
      %136 = vsyncadd [#allocation4], %s135
      %s137 = sshll.u32 [#allocation3], 4
      %s138 = int_to_ptr.vmem [resolvable:$true] %s137
      %143 = dma.vmem_to_hbm [thread:$0]  %s138, 256, %s2, [#allocation4], 128, 128, 8
    $region21: #{causal_self_attention_forward.5} parent=1 // pred_fallthru
      _
    // Predicated region
    $region22: #{causal_self_attention_forward.5} parent=1 // pred_check
      _
    $region23: #{causal_self_attention_forward.5} parent=1 // pred_check_branch
      %145 = sbr.rel (0) target = $region25
    $region24: #{causal_self_attention_forward.5} parent=1 // pred_region
      %146 = dma.done [#allocation4], 256
    $region25: #{causal_self_attention_forward.5} parent=1 // pred_fallthru
      _
    %147 = vsyncpa [#allocation4], 1

</llo_original>
